<compile_context>
chip_gen: v5e
topology: v5e:2x2
jax: 0.10.0
libtpu: 0.0.40
codegen_flags: <defaults>
</compile_context>

<pallas_src>
import jax
import jax.numpy as jnp
import numpy as np
from jax.experimental import pallas as pl
from jax.experimental.pallas import tpu as pltpu

# Synthetic hyperparameters mirroring the PyTorch `hyperparameters` dict.
CONV = dict(input_shape=(16, 16, 4), n_layers=2, kernel_size=3, n_filters=8,
            stride=1, activation="relu")          # 'same' padding => stride must be 1
POOL = dict(n_layers=1, kernel_size=2, stride=2)
DENSE = dict(n_layers=3, n_units=32)


def _resident(shape):
    """Full-array block with a constant index_map: DMA'd once, stays VMEM-resident."""
    zeros = (0,) * len(shape)
    return pl.BlockSpec(shape, lambda n: zeros)


def cnn_forward(x_nchw, params):
    N, Cin, H, W = x_nchw.shape
    HW = H * W
    F = CONV["n_filters"]
    K = CONV["kernel_size"]
    U = DENSE["n_units"]
    T = K * K
    assert CONV["stride"] == 1, "padding='same' requires stride=1"
    assert CONV["n_layers"] == 2 and POOL["n_layers"] == 1 and DENSE["n_layers"] == 3
    kp, sp = POOL["kernel_size"], POOL["stride"]
    assert kp == 2 and sp == 2, "fused pooling path is specialized to MaxPool2d(2, 2)"
    Ho, Wo = (H - kp) // sp + 1, (W - kp) // sp + 1
    P = Ho * Wo

    # ---------------- wrapper-side (parameter-sized) layout plumbing ----------------
    # NCHW -> per-sample lane-dense [C, H*W] (no transpose needed: NCHW is already C-major).
    x = x_nchw.reshape(N, Cin, HW)

    # Per-tap conv weights: torch OIHW [Cout, Cin, KH, KW] -> [T, Cout, Cin],
    # tap order t = kh*K + kw (row-major), matching the shift/mask order below.
    wc1 = jnp.transpose(params["w1"], (2, 3, 0, 1)).reshape(T, F, Cin)
    wc2 = jnp.transpose(params["w2"], (2, 3, 0, 1)).reshape(T, F, F)
    bc1 = params["b1"].reshape(F, 1)
    bc2 = params["b2"].reshape(F, 1)

    # Tap roll amounts + boundary-validity masks ('same' zero padding), shared by both
    # conv layers.  tap (dh, dw): src flat index = f + dh*W + dw  ==  roll(x, -(dh*W+dw)).
    f = np.arange(HW)
    hh, ww = f // W, f % W
    shifts, masks = [], []
    for dh in range(-(K // 2), K // 2 + 1):
        for dw in range(-(K // 2), K // 2 + 1):
            shifts.append(int((-(dh * W + dw)) % HW))
            valid = (hh + dh >= 0) & (hh + dh < H) & (ww + dw >= 0) & (ww + dw < W)
            masks.append(valid.astype(np.float32))
    shifts = tuple(shifts)
    masks = jnp.asarray(np.stack(masks)[:, None, :])          # [T, 1, HW]

    # Fold the 2x2/2 max-pool lane selection and torch's NCHW flatten
    # (feature = c*Ho*Wo + ho*Wo + wo) into the first dense weight:
    #   w1p[c, f, u] = wd1[c*P + q(f), u]  if f is a pool-window top-left lane, else 0.
    topleft = (hh % sp == 0) & (ww % sp == 0) & (hh // sp < Ho) & (ww // sp < Wo)
    q = (hh // sp) * Wo + (ww // sp)
    sel = (topleft[:, None] & (q[:, None] == np.arange(P)[None, :])).astype(np.float32)
    w1p = jnp.einsum("fq,cqu->cfu", jnp.asarray(sel),
                     params["wd1"].reshape(F, P, U))           # [F, HW, U]

    bd1 = params["bd1"].reshape(1, U)
    wd2, bd2 = params["wd2"], params["bd2"].reshape(1, U)
    wd3, bd3 = params["wd3"], params["bd3"].reshape(1, 1)

    # --------------------------------- fused kernel ---------------------------------
    def kernel(x_ref, m_ref, wc1_ref, bc1_ref, wc2_ref, bc2_ref,
               w1p_ref, bd1_ref, wd2_ref, bd2_ref, wd3_ref, bd3_ref, o_ref):

        def conv_same_relu(a, w_ref, b_ref):
            # a: [Ci, HW] lane-dense activation -> [F, HW]
            acc = jnp.zeros((F, HW), jnp.float32)
            for t in range(T):
                if shifts[t] == 0:
                    tap = a                         # centre tap: no shift, all-ones mask
                else:
                    tap = pltpu.roll(a, shifts[t], axis=1) * m_ref[t]
                acc = acc + jnp.dot(w_ref[t], tap,
                                    preferred_element_type=jnp.float32)
            return jnp.maximum(acc + b_ref[...], 0.0)

        a1 = conv_same_relu(x_ref[0], wc1_ref, bc1_ref)        # [F, HW]
        a2 = conv_same_relu(a1, wc2_ref, bc2_ref)              # [F, HW]

        # MaxPool2d(2, 2): window max lands at each window's top-left lane
        # (only those lanes are picked up by w1p below).
        m1 = jnp.maximum(a2, pltpu.roll(a2, HW - 1, axis=1))   # pair along w: max(x[f], x[f+1])
        m2 = jnp.maximum(m1, pltpu.roll(m1, HW - W, axis=1))   # pair along h: + rows f+W, f+W+1

        # Dense 1 (pool selection + NCHW flatten folded into w1p) + ReLU.
        y = jnp.zeros((1, U), jnp.float32)
        for c in range(F):
            y = y + jnp.dot(m2[c:c + 1, :], w1p_ref[c],
                            preferred_element_type=jnp.float32)
        y = jnp.maximum(y + bd1_ref[...], 0.0)
        # Dense 2 + ReLU.
        y = jnp.maximum(jnp.dot(y, wd2_ref[...],
                                preferred_element_type=jnp.float32) + bd2_ref[...], 0.0)
        # Dense 3 (final linear head).
        o_ref[0] = jnp.dot(y, wd3_ref[...],
                           preferred_element_type=jnp.float32) + bd3_ref[...]

    out = pl.pallas_call(
        kernel,
        out_shape=jax.ShapeDtypeStruct((N, 1, 1), jnp.float32),
        grid=(N,),
        in_specs=[
            pl.BlockSpec((1, Cin, HW), lambda n: (n, 0, 0)),   # per-sample input block
            _resident(masks.shape),
            _resident(wc1.shape), _resident(bc1.shape),
            _resident(wc2.shape), _resident(bc2.shape),
            _resident(w1p.shape), _resident(bd1.shape),
            _resident(wd2.shape), _resident(bd2.shape),
            _resident(wd3.shape), _resident(bd3.shape),
        ],
        out_specs=pl.BlockSpec((1, 1, 1), lambda n: (n, 0, 0)),
        compiler_params=pltpu.CompilerParams(
            dimension_semantics=("parallel",)),                # v7x: 2 TCs split the batch
    )(x, masks, wc1, bc1, wc2, bc2, w1p, bd1, wd2, bd2, wd3, bd3)
    return out.reshape(N, 1)
    # NOTE: the reference module's debug `print(x.shape)` in forward() is intentionally omitted.


# ------------------------------- params & reference --------------------------------
def init_params(key):
    H, W, Cin = CONV["input_shape"]
    K, F = CONV["kernel_size"], CONV["n_filters"]
    U = DENSE["n_units"]
    Ho = H // (POOL["stride"] ** POOL["n_layers"])
    Wo = W // (POOL["stride"] ** POOL["n_layers"])
    flat = F * Ho * Wo                            # what nn.LazyLinear infers
    ks = jax.random.split(key, 10)
    s = 0.05
    return {
        "w1": jax.random.normal(ks[0], (F, Cin, K, K), jnp.float32) * s,   # torch OIHW
        "b1": jax.random.normal(ks[1], (F,), jnp.float32) * s,
        "w2": jax.random.normal(ks[2], (F, F, K, K), jnp.float32) * s,
        "b2": jax.random.normal(ks[3], (F,), jnp.float32) * s,
        "wd1": jax.random.normal(ks[4], (flat, U), jnp.float32) * s,       # y = x @ wd1 + bd1
        "bd1": jax.random.normal(ks[5], (U,), jnp.float32) * s,
        "wd2": jax.random.normal(ks[6], (U, U), jnp.float32) * s,
        "bd2": jax.random.normal(ks[7], (U,), jnp.float32) * s,
        "wd3": jax.random.normal(ks[8], (U, 1), jnp.float32) * s,
        "bd3": jax.random.normal(ks[9], (1,), jnp.float32) * s,
    }


def cnn_reference(x_nchw, params):
    """Pure-XLA reference matching the PyTorch module (for a numerical sanity check)."""
    dn = ("NCHW", "OIHW", "NCHW")
    y = jax.lax.conv_general_dilated(x_nchw, params["w1"], (1, 1), "SAME",
                                     dimension_numbers=dn)
    y = jax.nn.relu(y + params["b1"][None, :, None, None])
    y = jax.lax.conv_general_dilated(y, params["w2"], (1, 1), "SAME",
                                     dimension_numbers=dn)
    y = jax.nn.relu(y + params["b2"][None, :, None, None])
    kp, sp = POOL["kernel_size"], POOL["stride"]
    y = jax.lax.reduce_window(y, -jnp.inf, jax.lax.max,
                              (1, 1, kp, kp), (1, 1, sp, sp), "VALID")
    y = y.reshape(y.shape[0], -1)                 # torch x.view(N, -1) on NCHW
    y = jax.nn.relu(y @ params["wd1"] + params["bd1"])
    y = jax.nn.relu(y @ params["wd2"] + params["bd2"])
    return y @ params["wd3"] + params["bd3"]


if __name__ == "__main__":
    key = jax.random.PRNGKey(0)
    kx, kparam = jax.random.split(key)
    H, W, Cin = CONV["input_shape"]
    x = jax.random.normal(kx, (2, Cin, H, W), jnp.float32)    # NCHW, like PyTorch
    params = init_params(kparam)

    out = jax.jit(cnn_forward)(x, params)
    out = jax.block_until_ready(out)
    assert out.shape == (2, 1), out.shape

    ref = jax.block_until_ready(jax.jit(cnn_reference)(x, params))
    if not np.allclose(np.asarray(out), np.asarray(ref), rtol=1e-2, atol=1e-2):
        raise SystemExit("numerical mismatch vs reference: max|diff|="
                         f"{float(np.max(np.abs(np.asarray(out) - np.asarray(ref))))}")
    print("KERNEL_OK")
</pallas_src>

<mosaic_0001>
module attributes {stable_mosaic.version = 11 : i64} {
  func.func @kernel(%arg0: i32, %arg1: memref<1x4x256xf32, #tpu.memory_space<vmem>>, %arg2: memref<9x1x256xf32, #tpu.memory_space<vmem>>, %arg3: memref<9x8x4xf32, #tpu.memory_space<vmem>>, %arg4: memref<8x1xf32, #tpu.memory_space<vmem>>, %arg5: memref<9x8x8xf32, #tpu.memory_space<vmem>>, %arg6: memref<8x1xf32, #tpu.memory_space<vmem>>, %arg7: memref<8x256x32xf32, #tpu.memory_space<vmem>>, %arg8: memref<1x32xf32, #tpu.memory_space<vmem>>, %arg9: memref<32x32xf32, #tpu.memory_space<vmem>>, %arg10: memref<1x32xf32, #tpu.memory_space<vmem>>, %arg11: memref<32x1xf32, #tpu.memory_space<vmem>>, %arg12: memref<1x1xf32, #tpu.memory_space<vmem>>, %arg13: memref<1x1x1xf32, #tpu.memory_space<vmem>>) attributes {dimension_semantics = [#tpu.dimension_semantics<parallel>], iteration_bounds = array<i64: 2>, scalar_prefetch = 0 : i64, scratch_operands = 0 : i64, tpu.core_type = #tpu.core_type<tc>, window_params = [{transform_indices = @transform_0, window_bounds = array<i64: 1, 4, 256>}, {pipeline_mode = #tpu.pipeline_mode<synchronous>, transform_indices = @transform_1, window_bounds = array<i64: 9, 1, 256>}, {pipeline_mode = #tpu.pipeline_mode<synchronous>, transform_indices = @transform_2, window_bounds = array<i64: 9, 8, 4>}, {pipeline_mode = #tpu.pipeline_mode<synchronous>, transform_indices = @transform_3, window_bounds = array<i64: 8, 1>}, {pipeline_mode = #tpu.pipeline_mode<synchronous>, transform_indices = @transform_4, window_bounds = array<i64: 9, 8, 8>}, {pipeline_mode = #tpu.pipeline_mode<synchronous>, transform_indices = @transform_5, window_bounds = array<i64: 8, 1>}, {pipeline_mode = #tpu.pipeline_mode<synchronous>, transform_indices = @transform_6, window_bounds = array<i64: 8, 256, 32>}, {pipeline_mode = #tpu.pipeline_mode<synchronous>, transform_indices = @transform_7, window_bounds = array<i64: 1, 32>}, {pipeline_mode = #tpu.pipeline_mode<synchronous>, transform_indices = @transform_8, window_bounds = array<i64: 32, 32>}, {pipeline_mode = #tpu.pipeline_mode<synchronous>, transform_indices = @transform_9, window_bounds = array<i64: 1, 32>}, {pipeline_mode = #tpu.pipeline_mode<synchronous>, transform_indices = @transform_10, window_bounds = array<i64: 32, 1>}, {pipeline_mode = #tpu.pipeline_mode<synchronous>, transform_indices = @transform_11, window_bounds = array<i64: 1, 1>}, {transform_indices = @transform_12, window_bounds = array<i64: 1, 1, 1>}]} {
    %c0 = arith.constant 0 : index
    %c0_0 = arith.constant 0 : index
    %c0_1 = arith.constant 0 : index
    %0 = vector.load %arg1[%c0, %c0_0, %c0_1] : memref<1x4x256xf32, #tpu.memory_space<vmem>>, vector<1x4x256xf32>
    %1 = vector.shape_cast %0 : vector<1x4x256xf32> to vector<4x256xf32>
    %cst = arith.constant 0.000000e+00 : f32
    %2 = vector.broadcast %cst : f32 to vector<8x256xf32>
    %c17_i32 = arith.constant 17 : i32
    %3 = tpu.dynamic_rotate %1 by %c17_i32 dim 1 : vector<4x256xf32>, i32 -> vector<4x256xf32>
    %c0_2 = arith.constant 0 : index
    %c0_3 = arith.constant 0 : index
    %c0_4 = arith.constant 0 : index
    %4 = vector.load %arg2[%c0_2, %c0_3, %c0_4] : memref<9x1x256xf32, #tpu.memory_space<vmem>>, vector<1x1x256xf32>
    %5 = vector.shape_cast %4 : vector<1x1x256xf32> to vector<1x256xf32>
    %6 = vector.broadcast %5 : vector<1x256xf32> to vector<4x256xf32>
    %7 = arith.mulf %3, %6 : vector<4x256xf32>
    %c0_5 = arith.constant 0 : index
    %c0_6 = arith.constant 0 : index
    %c0_7 = arith.constant 0 : index
    %8 = vector.load %arg3[%c0_5, %c0_6, %c0_7] : memref<9x8x4xf32, #tpu.memory_space<vmem>>, vector<1x8x4xf32>
    %9 = vector.shape_cast %8 : vector<1x8x4xf32> to vector<8x4xf32>
    %cst_8 = arith.constant dense<0.000000e+00> : vector<8x256xf32>
    %10 = tpu.matmul %9, %7, %cst_8 {dimension_numbers = #tpu.dot_dimension_numbers<[1], [0], [0], [1], [0, 0, 1, 1], [], []>} : vector<8x4xf32>, vector<4x256xf32>, vector<8x256xf32> -> vector<8x256xf32>
    %11 = arith.addf %2, %10 : vector<8x256xf32>
    %c16_i32 = arith.constant 16 : i32
    %12 = tpu.dynamic_rotate %1 by %c16_i32 dim 1 : vector<4x256xf32>, i32 -> vector<4x256xf32>
    %c1 = arith.constant 1 : index
    %c0_9 = arith.constant 0 : index
    %c0_10 = arith.constant 0 : index
    %13 = vector.load %arg2[%c1, %c0_9, %c0_10] : memref<9x1x256xf32, #tpu.memory_space<vmem>>, vector<1x1x256xf32>
    %14 = vector.shape_cast %13 : vector<1x1x256xf32> to vector<1x256xf32>
    %15 = vector.broadcast %14 : vector<1x256xf32> to vector<4x256xf32>
    %16 = arith.mulf %12, %15 : vector<4x256xf32>
    %c1_11 = arith.constant 1 : index
    %c0_12 = arith.constant 0 : index
    %c0_13 = arith.constant 0 : index
    %17 = vector.load %arg3[%c1_11, %c0_12, %c0_13] : memref<9x8x4xf32, #tpu.memory_space<vmem>>, vector<1x8x4xf32>
    %18 = vector.shape_cast %17 : vector<1x8x4xf32> to vector<8x4xf32>
    %cst_14 = arith.constant dense<0.000000e+00> : vector<8x256xf32>
    %19 = tpu.matmul %18, %16, %cst_14 {dimension_numbers = #tpu.dot_dimension_numbers<[1], [0], [0], [1], [0, 0, 1, 1], [], []>} : vector<8x4xf32>, vector<4x256xf32>, vector<8x256xf32> -> vector<8x256xf32>
    %20 = arith.addf %11, %19 : vector<8x256xf32>
    %c15_i32 = arith.constant 15 : i32
    %21 = tpu.dynamic_rotate %1 by %c15_i32 dim 1 : vector<4x256xf32>, i32 -> vector<4x256xf32>
    %c2 = arith.constant 2 : index
    %c0_15 = arith.constant 0 : index
    %c0_16 = arith.constant 0 : index
    %22 = vector.load %arg2[%c2, %c0_15, %c0_16] : memref<9x1x256xf32, #tpu.memory_space<vmem>>, vector<1x1x256xf32>
    %23 = vector.shape_cast %22 : vector<1x1x256xf32> to vector<1x256xf32>
    %24 = vector.broadcast %23 : vector<1x256xf32> to vector<4x256xf32>
    %25 = arith.mulf %21, %24 : vector<4x256xf32>
    %c2_17 = arith.constant 2 : index
    %c0_18 = arith.constant 0 : index
    %c0_19 = arith.constant 0 : index
    %26 = vector.load %arg3[%c2_17, %c0_18, %c0_19] : memref<9x8x4xf32, #tpu.memory_space<vmem>>, vector<1x8x4xf32>
    %27 = vector.shape_cast %26 : vector<1x8x4xf32> to vector<8x4xf32>
    %cst_20 = arith.constant dense<0.000000e+00> : vector<8x256xf32>
    %28 = tpu.matmul %27, %25, %cst_20 {dimension_numbers = #tpu.dot_dimension_numbers<[1], [0], [0], [1], [0, 0, 1, 1], [], []>} : vector<8x4xf32>, vector<4x256xf32>, vector<8x256xf32> -> vector<8x256xf32>
    %29 = arith.addf %20, %28 : vector<8x256xf32>
    %c1_i32 = arith.constant 1 : i32
    %30 = tpu.dynamic_rotate %1 by %c1_i32 dim 1 : vector<4x256xf32>, i32 -> vector<4x256xf32>
    %c3 = arith.constant 3 : index
    %c0_21 = arith.constant 0 : index
    %c0_22 = arith.constant 0 : index
    %31 = vector.load %arg2[%c3, %c0_21, %c0_22] : memref<9x1x256xf32, #tpu.memory_space<vmem>>, vector<1x1x256xf32>
    %32 = vector.shape_cast %31 : vector<1x1x256xf32> to vector<1x256xf32>
    %33 = vector.broadcast %32 : vector<1x256xf32> to vector<4x256xf32>
    %34 = arith.mulf %30, %33 : vector<4x256xf32>
    %c3_23 = arith.constant 3 : index
    %c0_24 = arith.constant 0 : index
    %c0_25 = arith.constant 0 : index
    %35 = vector.load %arg3[%c3_23, %c0_24, %c0_25] : memref<9x8x4xf32, #tpu.memory_space<vmem>>, vector<1x8x4xf32>
    %36 = vector.shape_cast %35 : vector<1x8x4xf32> to vector<8x4xf32>
    %cst_26 = arith.constant dense<0.000000e+00> : vector<8x256xf32>
    %37 = tpu.matmul %36, %34, %cst_26 {dimension_numbers = #tpu.dot_dimension_numbers<[1], [0], [0], [1], [0, 0, 1, 1], [], []>} : vector<8x4xf32>, vector<4x256xf32>, vector<8x256xf32> -> vector<8x256xf32>
    %38 = arith.addf %29, %37 : vector<8x256xf32>
    %c4 = arith.constant 4 : index
    %c0_27 = arith.constant 0 : index
    %c0_28 = arith.constant 0 : index
    %39 = vector.load %arg3[%c4, %c0_27, %c0_28] : memref<9x8x4xf32, #tpu.memory_space<vmem>>, vector<1x8x4xf32>
    %40 = vector.shape_cast %39 : vector<1x8x4xf32> to vector<8x4xf32>
    %cst_29 = arith.constant dense<0.000000e+00> : vector<8x256xf32>
    %41 = tpu.matmul %40, %1, %cst_29 {dimension_numbers = #tpu.dot_dimension_numbers<[1], [0], [0], [1], [0, 0, 1, 1], [], []>} : vector<8x4xf32>, vector<4x256xf32>, vector<8x256xf32> -> vector<8x256xf32>
    %42 = arith.addf %38, %41 : vector<8x256xf32>
    %c255_i32 = arith.constant 255 : i32
    %43 = tpu.dynamic_rotate %1 by %c255_i32 dim 1 : vector<4x256xf32>, i32 -> vector<4x256xf32>
    %c5 = arith.constant 5 : index
    %c0_30 = arith.constant 0 : index
    %c0_31 = arith.constant 0 : index
    %44 = vector.load %arg2[%c5, %c0_30, %c0_31] : memref<9x1x256xf32, #tpu.memory_space<vmem>>, vector<1x1x256xf32>
    %45 = vector.shape_cast %44 : vector<1x1x256xf32> to vector<1x256xf32>
    %46 = vector.broadcast %45 : vector<1x256xf32> to vector<4x256xf32>
    %47 = arith.mulf %43, %46 : vector<4x256xf32>
    %c5_32 = arith.constant 5 : index
    %c0_33 = arith.constant 0 : index
    %c0_34 = arith.constant 0 : index
    %48 = vector.load %arg3[%c5_32, %c0_33, %c0_34] : memref<9x8x4xf32, #tpu.memory_space<vmem>>, vector<1x8x4xf32>
    %49 = vector.shape_cast %48 : vector<1x8x4xf32> to vector<8x4xf32>
    %cst_35 = arith.constant dense<0.000000e+00> : vector<8x256xf32>
    %50 = tpu.matmul %49, %47, %cst_35 {dimension_numbers = #tpu.dot_dimension_numbers<[1], [0], [0], [1], [0, 0, 1, 1], [], []>} : vector<8x4xf32>, vector<4x256xf32>, vector<8x256xf32> -> vector<8x256xf32>
    %51 = arith.addf %42, %50 : vector<8x256xf32>
    %c241_i32 = arith.constant 241 : i32
    %52 = tpu.dynamic_rotate %1 by %c241_i32 dim 1 : vector<4x256xf32>, i32 -> vector<4x256xf32>
    %c6 = arith.constant 6 : index
    %c0_36 = arith.constant 0 : index
    %c0_37 = arith.constant 0 : index
    %53 = vector.load %arg2[%c6, %c0_36, %c0_37] : memref<9x1x256xf32, #tpu.memory_space<vmem>>, vector<1x1x256xf32>
    %54 = vector.shape_cast %53 : vector<1x1x256xf32> to vector<1x256xf32>
    %55 = vector.broadcast %54 : vector<1x256xf32> to vector<4x256xf32>
    %56 = arith.mulf %52, %55 : vector<4x256xf32>
    %c6_38 = arith.constant 6 : index
    %c0_39 = arith.constant 0 : index
    %c0_40 = arith.constant 0 : index
    %57 = vector.load %arg3[%c6_38, %c0_39, %c0_40] : memref<9x8x4xf32, #tpu.memory_space<vmem>>, vector<1x8x4xf32>
    %58 = vector.shape_cast %57 : vector<1x8x4xf32> to vector<8x4xf32>
    %cst_41 = arith.constant dense<0.000000e+00> : vector<8x256xf32>
    %59 = tpu.matmul %58, %56, %cst_41 {dimension_numbers = #tpu.dot_dimension_numbers<[1], [0], [0], [1], [0, 0, 1, 1], [], []>} : vector<8x4xf32>, vector<4x256xf32>, vector<8x256xf32> -> vector<8x256xf32>
    %60 = arith.addf %51, %59 : vector<8x256xf32>
    %c240_i32 = arith.constant 240 : i32
    %61 = tpu.dynamic_rotate %1 by %c240_i32 dim 1 : vector<4x256xf32>, i32 -> vector<4x256xf32>
    %c7 = arith.constant 7 : index
    %c0_42 = arith.constant 0 : index
    %c0_43 = arith.constant 0 : index
    %62 = vector.load %arg2[%c7, %c0_42, %c0_43] : memref<9x1x256xf32, #tpu.memory_space<vmem>>, vector<1x1x256xf32>
    %63 = vector.shape_cast %62 : vector<1x1x256xf32> to vector<1x256xf32>
    %64 = vector.broadcast %63 : vector<1x256xf32> to vector<4x256xf32>
    %65 = arith.mulf %61, %64 : vector<4x256xf32>
    %c7_44 = arith.constant 7 : index
    %c0_45 = arith.constant 0 : index
    %c0_46 = arith.constant 0 : index
    %66 = vector.load %arg3[%c7_44, %c0_45, %c0_46] : memref<9x8x4xf32, #tpu.memory_space<vmem>>, vector<1x8x4xf32>
    %67 = vector.shape_cast %66 : vector<1x8x4xf32> to vector<8x4xf32>
    %cst_47 = arith.constant dense<0.000000e+00> : vector<8x256xf32>
    %68 = tpu.matmul %67, %65, %cst_47 {dimension_numbers = #tpu.dot_dimension_numbers<[1], [0], [0], [1], [0, 0, 1, 1], [], []>} : vector<8x4xf32>, vector<4x256xf32>, vector<8x256xf32> -> vector<8x256xf32>
    %69 = arith.addf %60, %68 : vector<8x256xf32>
    %c239_i32 = arith.constant 239 : i32
    %70 = tpu.dynamic_rotate %1 by %c239_i32 dim 1 : vector<4x256xf32>, i32 -> vector<4x256xf32>
    %c8 = arith.constant 8 : index
    %c0_48 = arith.constant 0 : index
    %c0_49 = arith.constant 0 : index
    %71 = vector.load %arg2[%c8, %c0_48, %c0_49] : memref<9x1x256xf32, #tpu.memory_space<vmem>>, vector<1x1x256xf32>
    %72 = vector.shape_cast %71 : vector<1x1x256xf32> to vector<1x256xf32>
    %73 = vector.broadcast %72 : vector<1x256xf32> to vector<4x256xf32>
    %74 = arith.mulf %70, %73 : vector<4x256xf32>
    %c8_50 = arith.constant 8 : index
    %c0_51 = arith.constant 0 : index
    %c0_52 = arith.constant 0 : index
    %75 = vector.load %arg3[%c8_50, %c0_51, %c0_52] : memref<9x8x4xf32, #tpu.memory_space<vmem>>, vector<1x8x4xf32>
    %76 = vector.shape_cast %75 : vector<1x8x4xf32> to vector<8x4xf32>
    %cst_53 = arith.constant dense<0.000000e+00> : vector<8x256xf32>
    %77 = tpu.matmul %76, %74, %cst_53 {dimension_numbers = #tpu.dot_dimension_numbers<[1], [0], [0], [1], [0, 0, 1, 1], [], []>} : vector<8x4xf32>, vector<4x256xf32>, vector<8x256xf32> -> vector<8x256xf32>
    %78 = arith.addf %69, %77 : vector<8x256xf32>
    %c0_54 = arith.constant 0 : index
    %c0_55 = arith.constant 0 : index
    %79 = vector.load %arg4[%c0_54, %c0_55] : memref<8x1xf32, #tpu.memory_space<vmem>>, vector<8x1xf32>
    %80 = vector.broadcast %79 : vector<8x1xf32> to vector<8x256xf32>
    %81 = arith.addf %78, %80 : vector<8x256xf32>
    %cst_56 = arith.constant 0.000000e+00 : f32
    %82 = vector.broadcast %cst_56 : f32 to vector<8x256xf32>
    %83 = arith.maximumf %81, %82 : vector<8x256xf32>
    %cst_57 = arith.constant 0.000000e+00 : f32
    %84 = vector.broadcast %cst_57 : f32 to vector<8x256xf32>
    %c17_i32_58 = arith.constant 17 : i32
    %85 = tpu.dynamic_rotate %83 by %c17_i32_58 dim 1 : vector<8x256xf32>, i32 -> vector<8x256xf32>
    %c0_59 = arith.constant 0 : index
    %c0_60 = arith.constant 0 : index
    %c0_61 = arith.constant 0 : index
    %86 = vector.load %arg2[%c0_59, %c0_60, %c0_61] : memref<9x1x256xf32, #tpu.memory_space<vmem>>, vector<1x1x256xf32>
    %87 = vector.shape_cast %86 : vector<1x1x256xf32> to vector<1x256xf32>
    %88 = vector.broadcast %87 : vector<1x256xf32> to vector<8x256xf32>
    %89 = arith.mulf %85, %88 : vector<8x256xf32>
    %c0_62 = arith.constant 0 : index
    %c0_63 = arith.constant 0 : index
    %c0_64 = arith.constant 0 : index
    %90 = vector.load %arg5[%c0_62, %c0_63, %c0_64] : memref<9x8x8xf32, #tpu.memory_space<vmem>>, vector<1x8x8xf32>
    %91 = vector.shape_cast %90 : vector<1x8x8xf32> to vector<8x8xf32>
    %cst_65 = arith.constant dense<0.000000e+00> : vector<8x256xf32>
    %92 = tpu.matmul %91, %89, %cst_65 {dimension_numbers = #tpu.dot_dimension_numbers<[1], [0], [0], [1], [0, 0, 1, 1], [], []>} : vector<8x8xf32>, vector<8x256xf32>, vector<8x256xf32> -> vector<8x256xf32>
    %93 = arith.addf %84, %92 : vector<8x256xf32>
    %c16_i32_66 = arith.constant 16 : i32
    %94 = tpu.dynamic_rotate %83 by %c16_i32_66 dim 1 : vector<8x256xf32>, i32 -> vector<8x256xf32>
    %c1_67 = arith.constant 1 : index
    %c0_68 = arith.constant 0 : index
    %c0_69 = arith.constant 0 : index
    %95 = vector.load %arg2[%c1_67, %c0_68, %c0_69] : memref<9x1x256xf32, #tpu.memory_space<vmem>>, vector<1x1x256xf32>
    %96 = vector.shape_cast %95 : vector<1x1x256xf32> to vector<1x256xf32>
    %97 = vector.broadcast %96 : vector<1x256xf32> to vector<8x256xf32>
    %98 = arith.mulf %94, %97 : vector<8x256xf32>
    %c1_70 = arith.constant 1 : index
    %c0_71 = arith.constant 0 : index
    %c0_72 = arith.constant 0 : index
    %99 = vector.load %arg5[%c1_70, %c0_71, %c0_72] : memref<9x8x8xf32, #tpu.memory_space<vmem>>, vector<1x8x8xf32>
    %100 = vector.shape_cast %99 : vector<1x8x8xf32> to vector<8x8xf32>
    %cst_73 = arith.constant dense<0.000000e+00> : vector<8x256xf32>
    %101 = tpu.matmul %100, %98, %cst_73 {dimension_numbers = #tpu.dot_dimension_numbers<[1], [0], [0], [1], [0, 0, 1, 1], [], []>} : vector<8x8xf32>, vector<8x256xf32>, vector<8x256xf32> -> vector<8x256xf32>
    %102 = arith.addf %93, %101 : vector<8x256xf32>
    %c15_i32_74 = arith.constant 15 : i32
    %103 = tpu.dynamic_rotate %83 by %c15_i32_74 dim 1 : vector<8x256xf32>, i32 -> vector<8x256xf32>
    %c2_75 = arith.constant 2 : index
    %c0_76 = arith.constant 0 : index
    %c0_77 = arith.constant 0 : index
    %104 = vector.load %arg2[%c2_75, %c0_76, %c0_77] : memref<9x1x256xf32, #tpu.memory_space<vmem>>, vector<1x1x256xf32>
    %105 = vector.shape_cast %104 : vector<1x1x256xf32> to vector<1x256xf32>
    %106 = vector.broadcast %105 : vector<1x256xf32> to vector<8x256xf32>
    %107 = arith.mulf %103, %106 : vector<8x256xf32>
    %c2_78 = arith.constant 2 : index
    %c0_79 = arith.constant 0 : index
    %c0_80 = arith.constant 0 : index
    %108 = vector.load %arg5[%c2_78, %c0_79, %c0_80] : memref<9x8x8xf32, #tpu.memory_space<vmem>>, vector<1x8x8xf32>
    %109 = vector.shape_cast %108 : vector<1x8x8xf32> to vector<8x8xf32>
    %cst_81 = arith.constant dense<0.000000e+00> : vector<8x256xf32>
    %110 = tpu.matmul %109, %107, %cst_81 {dimension_numbers = #tpu.dot_dimension_numbers<[1], [0], [0], [1], [0, 0, 1, 1], [], []>} : vector<8x8xf32>, vector<8x256xf32>, vector<8x256xf32> -> vector<8x256xf32>
    %111 = arith.addf %102, %110 : vector<8x256xf32>
    %c1_i32_82 = arith.constant 1 : i32
    %112 = tpu.dynamic_rotate %83 by %c1_i32_82 dim 1 : vector<8x256xf32>, i32 -> vector<8x256xf32>
    %c3_83 = arith.constant 3 : index
    %c0_84 = arith.constant 0 : index
    %c0_85 = arith.constant 0 : index
    %113 = vector.load %arg2[%c3_83, %c0_84, %c0_85] : memref<9x1x256xf32, #tpu.memory_space<vmem>>, vector<1x1x256xf32>
    %114 = vector.shape_cast %113 : vector<1x1x256xf32> to vector<1x256xf32>
    %115 = vector.broadcast %114 : vector<1x256xf32> to vector<8x256xf32>
    %116 = arith.mulf %112, %115 : vector<8x256xf32>
    %c3_86 = arith.constant 3 : index
    %c0_87 = arith.constant 0 : index
    %c0_88 = arith.constant 0 : index
    %117 = vector.load %arg5[%c3_86, %c0_87, %c0_88] : memref<9x8x8xf32, #tpu.memory_space<vmem>>, vector<1x8x8xf32>
    %118 = vector.shape_cast %117 : vector<1x8x8xf32> to vector<8x8xf32>
    %cst_89 = arith.constant dense<0.000000e+00> : vector<8x256xf32>
    %119 = tpu.matmul %118, %116, %cst_89 {dimension_numbers = #tpu.dot_dimension_numbers<[1], [0], [0], [1], [0, 0, 1, 1], [], []>} : vector<8x8xf32>, vector<8x256xf32>, vector<8x256xf32> -> vector<8x256xf32>
    %120 = arith.addf %111, %119 : vector<8x256xf32>
    %c4_90 = arith.constant 4 : index
    %c0_91 = arith.constant 0 : index
    %c0_92 = arith.constant 0 : index
    %121 = vector.load %arg5[%c4_90, %c0_91, %c0_92] : memref<9x8x8xf32, #tpu.memory_space<vmem>>, vector<1x8x8xf32>
    %122 = vector.shape_cast %121 : vector<1x8x8xf32> to vector<8x8xf32>
    %cst_93 = arith.constant dense<0.000000e+00> : vector<8x256xf32>
    %123 = tpu.matmul %122, %83, %cst_93 {dimension_numbers = #tpu.dot_dimension_numbers<[1], [0], [0], [1], [0, 0, 1, 1], [], []>} : vector<8x8xf32>, vector<8x256xf32>, vector<8x256xf32> -> vector<8x256xf32>
    %124 = arith.addf %120, %123 : vector<8x256xf32>
    %c255_i32_94 = arith.constant 255 : i32
    %125 = tpu.dynamic_rotate %83 by %c255_i32_94 dim 1 : vector<8x256xf32>, i32 -> vector<8x256xf32>
    %c5_95 = arith.constant 5 : index
    %c0_96 = arith.constant 0 : index
    %c0_97 = arith.constant 0 : index
    %126 = vector.load %arg2[%c5_95, %c0_96, %c0_97] : memref<9x1x256xf32, #tpu.memory_space<vmem>>, vector<1x1x256xf32>
    %127 = vector.shape_cast %126 : vector<1x1x256xf32> to vector<1x256xf32>
    %128 = vector.broadcast %127 : vector<1x256xf32> to vector<8x256xf32>
    %129 = arith.mulf %125, %128 : vector<8x256xf32>
    %c5_98 = arith.constant 5 : index
    %c0_99 = arith.constant 0 : index
    %c0_100 = arith.constant 0 : index
    %130 = vector.load %arg5[%c5_98, %c0_99, %c0_100] : memref<9x8x8xf32, #tpu.memory_space<vmem>>, vector<1x8x8xf32>
    %131 = vector.shape_cast %130 : vector<1x8x8xf32> to vector<8x8xf32>
    %cst_101 = arith.constant dense<0.000000e+00> : vector<8x256xf32>
    %132 = tpu.matmul %131, %129, %cst_101 {dimension_numbers = #tpu.dot_dimension_numbers<[1], [0], [0], [1], [0, 0, 1, 1], [], []>} : vector<8x8xf32>, vector<8x256xf32>, vector<8x256xf32> -> vector<8x256xf32>
    %133 = arith.addf %124, %132 : vector<8x256xf32>
    %c241_i32_102 = arith.constant 241 : i32
    %134 = tpu.dynamic_rotate %83 by %c241_i32_102 dim 1 : vector<8x256xf32>, i32 -> vector<8x256xf32>
    %c6_103 = arith.constant 6 : index
    %c0_104 = arith.constant 0 : index
    %c0_105 = arith.constant 0 : index
    %135 = vector.load %arg2[%c6_103, %c0_104, %c0_105] : memref<9x1x256xf32, #tpu.memory_space<vmem>>, vector<1x1x256xf32>
    %136 = vector.shape_cast %135 : vector<1x1x256xf32> to vector<1x256xf32>
    %137 = vector.broadcast %136 : vector<1x256xf32> to vector<8x256xf32>
    %138 = arith.mulf %134, %137 : vector<8x256xf32>
    %c6_106 = arith.constant 6 : index
    %c0_107 = arith.constant 0 : index
    %c0_108 = arith.constant 0 : index
    %139 = vector.load %arg5[%c6_106, %c0_107, %c0_108] : memref<9x8x8xf32, #tpu.memory_space<vmem>>, vector<1x8x8xf32>
    %140 = vector.shape_cast %139 : vector<1x8x8xf32> to vector<8x8xf32>
    %cst_109 = arith.constant dense<0.000000e+00> : vector<8x256xf32>
    %141 = tpu.matmul %140, %138, %cst_109 {dimension_numbers = #tpu.dot_dimension_numbers<[1], [0], [0], [1], [0, 0, 1, 1], [], []>} : vector<8x8xf32>, vector<8x256xf32>, vector<8x256xf32> -> vector<8x256xf32>
    %142 = arith.addf %133, %141 : vector<8x256xf32>
    %c240_i32_110 = arith.constant 240 : i32
    %143 = tpu.dynamic_rotate %83 by %c240_i32_110 dim 1 : vector<8x256xf32>, i32 -> vector<8x256xf32>
    %c7_111 = arith.constant 7 : index
    %c0_112 = arith.constant 0 : index
    %c0_113 = arith.constant 0 : index
    %144 = vector.load %arg2[%c7_111, %c0_112, %c0_113] : memref<9x1x256xf32, #tpu.memory_space<vmem>>, vector<1x1x256xf32>
    %145 = vector.shape_cast %144 : vector<1x1x256xf32> to vector<1x256xf32>
    %146 = vector.broadcast %145 : vector<1x256xf32> to vector<8x256xf32>
    %147 = arith.mulf %143, %146 : vector<8x256xf32>
    %c7_114 = arith.constant 7 : index
    %c0_115 = arith.constant 0 : index
    %c0_116 = arith.constant 0 : index
    %148 = vector.load %arg5[%c7_114, %c0_115, %c0_116] : memref<9x8x8xf32, #tpu.memory_space<vmem>>, vector<1x8x8xf32>
    %149 = vector.shape_cast %148 : vector<1x8x8xf32> to vector<8x8xf32>
    %cst_117 = arith.constant dense<0.000000e+00> : vector<8x256xf32>
    %150 = tpu.matmul %149, %147, %cst_117 {dimension_numbers = #tpu.dot_dimension_numbers<[1], [0], [0], [1], [0, 0, 1, 1], [], []>} : vector<8x8xf32>, vector<8x256xf32>, vector<8x256xf32> -> vector<8x256xf32>
    %151 = arith.addf %142, %150 : vector<8x256xf32>
    %c239_i32_118 = arith.constant 239 : i32
    %152 = tpu.dynamic_rotate %83 by %c239_i32_118 dim 1 : vector<8x256xf32>, i32 -> vector<8x256xf32>
    %c8_119 = arith.constant 8 : index
    %c0_120 = arith.constant 0 : index
    %c0_121 = arith.constant 0 : index
    %153 = vector.load %arg2[%c8_119, %c0_120, %c0_121] : memref<9x1x256xf32, #tpu.memory_space<vmem>>, vector<1x1x256xf32>
    %154 = vector.shape_cast %153 : vector<1x1x256xf32> to vector<1x256xf32>
    %155 = vector.broadcast %154 : vector<1x256xf32> to vector<8x256xf32>
    %156 = arith.mulf %152, %155 : vector<8x256xf32>
    %c8_122 = arith.constant 8 : index
    %c0_123 = arith.constant 0 : index
    %c0_124 = arith.constant 0 : index
    %157 = vector.load %arg5[%c8_122, %c0_123, %c0_124] : memref<9x8x8xf32, #tpu.memory_space<vmem>>, vector<1x8x8xf32>
    %158 = vector.shape_cast %157 : vector<1x8x8xf32> to vector<8x8xf32>
    %cst_125 = arith.constant dense<0.000000e+00> : vector<8x256xf32>
    %159 = tpu.matmul %158, %156, %cst_125 {dimension_numbers = #tpu.dot_dimension_numbers<[1], [0], [0], [1], [0, 0, 1, 1], [], []>} : vector<8x8xf32>, vector<8x256xf32>, vector<8x256xf32> -> vector<8x256xf32>
    %160 = arith.addf %151, %159 : vector<8x256xf32>
    %c0_126 = arith.constant 0 : index
    %c0_127 = arith.constant 0 : index
    %161 = vector.load %arg6[%c0_126, %c0_127] : memref<8x1xf32, #tpu.memory_space<vmem>>, vector<8x1xf32>
    %162 = vector.broadcast %161 : vector<8x1xf32> to vector<8x256xf32>
    %163 = arith.addf %160, %162 : vector<8x256xf32>
    %cst_128 = arith.constant 0.000000e+00 : f32
    %164 = vector.broadcast %cst_128 : f32 to vector<8x256xf32>
    %165 = arith.maximumf %163, %164 : vector<8x256xf32>
    %c255_i32_129 = arith.constant 255 : i32
    %166 = tpu.dynamic_rotate %165 by %c255_i32_129 dim 1 : vector<8x256xf32>, i32 -> vector<8x256xf32>
    %167 = arith.maximumf %165, %166 : vector<8x256xf32>
    %c240_i32_130 = arith.constant 240 : i32
    %168 = tpu.dynamic_rotate %167 by %c240_i32_130 dim 1 : vector<8x256xf32>, i32 -> vector<8x256xf32>
    %169 = arith.maximumf %167, %168 : vector<8x256xf32>
    %cst_131 = arith.constant 0.000000e+00 : f32
    %170 = vector.broadcast %cst_131 : f32 to vector<1x32xf32>
    %171 = vector.extract_strided_slice %169 {offsets = [0, 0], sizes = [1, 256], strides = [1, 1]} : vector<8x256xf32> to vector<1x256xf32>
    %c0_132 = arith.constant 0 : index
    %c0_133 = arith.constant 0 : index
    %c0_134 = arith.constant 0 : index
    %172 = vector.load %arg7[%c0_132, %c0_133, %c0_134] : memref<8x256x32xf32, #tpu.memory_space<vmem>>, vector<1x256x32xf32>
    %173 = vector.shape_cast %172 : vector<1x256x32xf32> to vector<256x32xf32>
    %cst_135 = arith.constant dense<0.000000e+00> : vector<1x32xf32>
    %174 = tpu.matmul %171, %173, %cst_135 {dimension_numbers = #tpu.dot_dimension_numbers<[1], [0], [0], [1], [0, 0, 1, 1], [], []>} : vector<1x256xf32>, vector<256x32xf32>, vector<1x32xf32> -> vector<1x32xf32>
    %175 = arith.addf %170, %174 : vector<1x32xf32>
    %176 = vector.extract_strided_slice %169 {offsets = [1, 0], sizes = [1, 256], strides = [1, 1]} : vector<8x256xf32> to vector<1x256xf32>
    %c1_136 = arith.constant 1 : index
    %c0_137 = arith.constant 0 : index
    %c0_138 = arith.constant 0 : index
    %177 = vector.load %arg7[%c1_136, %c0_137, %c0_138] : memref<8x256x32xf32, #tpu.memory_space<vmem>>, vector<1x256x32xf32>
    %178 = vector.shape_cast %177 : vector<1x256x32xf32> to vector<256x32xf32>
    %cst_139 = arith.constant dense<0.000000e+00> : vector<1x32xf32>
    %179 = tpu.matmul %176, %178, %cst_139 {dimension_numbers = #tpu.dot_dimension_numbers<[1], [0], [0], [1], [0, 0, 1, 1], [], []>} : vector<1x256xf32>, vector<256x32xf32>, vector<1x32xf32> -> vector<1x32xf32>
    %180 = arith.addf %175, %179 : vector<1x32xf32>
    %181 = vector.extract_strided_slice %169 {offsets = [2, 0], sizes = [1, 256], strides = [1, 1]} : vector<8x256xf32> to vector<1x256xf32>
    %c2_140 = arith.constant 2 : index
    %c0_141 = arith.constant 0 : index
    %c0_142 = arith.constant 0 : index
    %182 = vector.load %arg7[%c2_140, %c0_141, %c0_142] : memref<8x256x32xf32, #tpu.memory_space<vmem>>, vector<1x256x32xf32>
    %183 = vector.shape_cast %182 : vector<1x256x32xf32> to vector<256x32xf32>
    %cst_143 = arith.constant dense<0.000000e+00> : vector<1x32xf32>
    %184 = tpu.matmul %181, %183, %cst_143 {dimension_numbers = #tpu.dot_dimension_numbers<[1], [0], [0], [1], [0, 0, 1, 1], [], []>} : vector<1x256xf32>, vector<256x32xf32>, vector<1x32xf32> -> vector<1x32xf32>
    %185 = arith.addf %180, %184 : vector<1x32xf32>
    %186 = vector.extract_strided_slice %169 {offsets = [3, 0], sizes = [1, 256], strides = [1, 1]} : vector<8x256xf32> to vector<1x256xf32>
    %c3_144 = arith.constant 3 : index
    %c0_145 = arith.constant 0 : index
    %c0_146 = arith.constant 0 : index
    %187 = vector.load %arg7[%c3_144, %c0_145, %c0_146] : memref<8x256x32xf32, #tpu.memory_space<vmem>>, vector<1x256x32xf32>
    %188 = vector.shape_cast %187 : vector<1x256x32xf32> to vector<256x32xf32>
    %cst_147 = arith.constant dense<0.000000e+00> : vector<1x32xf32>
    %189 = tpu.matmul %186, %188, %cst_147 {dimension_numbers = #tpu.dot_dimension_numbers<[1], [0], [0], [1], [0, 0, 1, 1], [], []>} : vector<1x256xf32>, vector<256x32xf32>, vector<1x32xf32> -> vector<1x32xf32>
    %190 = arith.addf %185, %189 : vector<1x32xf32>
    %191 = vector.extract_strided_slice %169 {offsets = [4, 0], sizes = [1, 256], strides = [1, 1]} : vector<8x256xf32> to vector<1x256xf32>
    %c4_148 = arith.constant 4 : index
    %c0_149 = arith.constant 0 : index
    %c0_150 = arith.constant 0 : index
    %192 = vector.load %arg7[%c4_148, %c0_149, %c0_150] : memref<8x256x32xf32, #tpu.memory_space<vmem>>, vector<1x256x32xf32>
    %193 = vector.shape_cast %192 : vector<1x256x32xf32> to vector<256x32xf32>
    %cst_151 = arith.constant dense<0.000000e+00> : vector<1x32xf32>
    %194 = tpu.matmul %191, %193, %cst_151 {dimension_numbers = #tpu.dot_dimension_numbers<[1], [0], [0], [1], [0, 0, 1, 1], [], []>} : vector<1x256xf32>, vector<256x32xf32>, vector<1x32xf32> -> vector<1x32xf32>
    %195 = arith.addf %190, %194 : vector<1x32xf32>
    %196 = vector.extract_strided_slice %169 {offsets = [5, 0], sizes = [1, 256], strides = [1, 1]} : vector<8x256xf32> to vector<1x256xf32>
    %c5_152 = arith.constant 5 : index
    %c0_153 = arith.constant 0 : index
    %c0_154 = arith.constant 0 : index
    %197 = vector.load %arg7[%c5_152, %c0_153, %c0_154] : memref<8x256x32xf32, #tpu.memory_space<vmem>>, vector<1x256x32xf32>
    %198 = vector.shape_cast %197 : vector<1x256x32xf32> to vector<256x32xf32>
    %cst_155 = arith.constant dense<0.000000e+00> : vector<1x32xf32>
    %199 = tpu.matmul %196, %198, %cst_155 {dimension_numbers = #tpu.dot_dimension_numbers<[1], [0], [0], [1], [0, 0, 1, 1], [], []>} : vector<1x256xf32>, vector<256x32xf32>, vector<1x32xf32> -> vector<1x32xf32>
    %200 = arith.addf %195, %199 : vector<1x32xf32>
    %201 = vector.extract_strided_slice %169 {offsets = [6, 0], sizes = [1, 256], strides = [1, 1]} : vector<8x256xf32> to vector<1x256xf32>
    %c6_156 = arith.constant 6 : index
    %c0_157 = arith.constant 0 : index
    %c0_158 = arith.constant 0 : index
    %202 = vector.load %arg7[%c6_156, %c0_157, %c0_158] : memref<8x256x32xf32, #tpu.memory_space<vmem>>, vector<1x256x32xf32>
    %203 = vector.shape_cast %202 : vector<1x256x32xf32> to vector<256x32xf32>
    %cst_159 = arith.constant dense<0.000000e+00> : vector<1x32xf32>
    %204 = tpu.matmul %201, %203, %cst_159 {dimension_numbers = #tpu.dot_dimension_numbers<[1], [0], [0], [1], [0, 0, 1, 1], [], []>} : vector<1x256xf32>, vector<256x32xf32>, vector<1x32xf32> -> vector<1x32xf32>
    %205 = arith.addf %200, %204 : vector<1x32xf32>
    %206 = vector.extract_strided_slice %169 {offsets = [7, 0], sizes = [1, 256], strides = [1, 1]} : vector<8x256xf32> to vector<1x256xf32>
    %c7_160 = arith.constant 7 : index
    %c0_161 = arith.constant 0 : index
    %c0_162 = arith.constant 0 : index
    %207 = vector.load %arg7[%c7_160, %c0_161, %c0_162] : memref<8x256x32xf32, #tpu.memory_space<vmem>>, vector<1x256x32xf32>
    %208 = vector.shape_cast %207 : vector<1x256x32xf32> to vector<256x32xf32>
    %cst_163 = arith.constant dense<0.000000e+00> : vector<1x32xf32>
    %209 = tpu.matmul %206, %208, %cst_163 {dimension_numbers = #tpu.dot_dimension_numbers<[1], [0], [0], [1], [0, 0, 1, 1], [], []>} : vector<1x256xf32>, vector<256x32xf32>, vector<1x32xf32> -> vector<1x32xf32>
    %210 = arith.addf %205, %209 : vector<1x32xf32>
    %c0_164 = arith.constant 0 : index
    %c0_165 = arith.constant 0 : index
    %211 = vector.load %arg8[%c0_164, %c0_165] : memref<1x32xf32, #tpu.memory_space<vmem>>, vector<1x32xf32>
    %212 = arith.addf %210, %211 : vector<1x32xf32>
    %cst_166 = arith.constant 0.000000e+00 : f32
    %213 = vector.broadcast %cst_166 : f32 to vector<1x32xf32>
    %214 = arith.maximumf %212, %213 : vector<1x32xf32>
    %c0_167 = arith.constant 0 : index
    %c0_168 = arith.constant 0 : index
    %215 = vector.load %arg9[%c0_167, %c0_168] : memref<32x32xf32, #tpu.memory_space<vmem>>, vector<32x32xf32>
    %cst_169 = arith.constant dense<0.000000e+00> : vector<1x32xf32>
    %216 = tpu.matmul %214, %215, %cst_169 {dimension_numbers = #tpu.dot_dimension_numbers<[1], [0], [0], [1], [0, 0, 1, 1], [], []>} : vector<1x32xf32>, vector<32x32xf32>, vector<1x32xf32> -> vector<1x32xf32>
    %c0_170 = arith.constant 0 : index
    %c0_171 = arith.constant 0 : index
    %217 = vector.load %arg10[%c0_170, %c0_171] : memref<1x32xf32, #tpu.memory_space<vmem>>, vector<1x32xf32>
    %218 = arith.addf %216, %217 : vector<1x32xf32>
    %cst_172 = arith.constant 0.000000e+00 : f32
    %219 = vector.broadcast %cst_172 : f32 to vector<1x32xf32>
    %220 = arith.maximumf %218, %219 : vector<1x32xf32>
    %c0_173 = arith.constant 0 : index
    %c0_174 = arith.constant 0 : index
    %221 = vector.load %arg11[%c0_173, %c0_174] : memref<32x1xf32, #tpu.memory_space<vmem>>, vector<32x1xf32>
    %cst_175 = arith.constant dense<0.000000e+00> : vector<1x1xf32>
    %222 = tpu.matmul %220, %221, %cst_175 {dimension_numbers = #tpu.dot_dimension_numbers<[1], [0], [0], [1], [0, 0, 1, 1], [], []>} : vector<1x32xf32>, vector<32x1xf32>, vector<1x1xf32> -> vector<1x1xf32>
    %c0_176 = arith.constant 0 : index
    %c0_177 = arith.constant 0 : index
    %223 = vector.load %arg12[%c0_176, %c0_177] : memref<1x1xf32, #tpu.memory_space<vmem>>, vector<1x1xf32>
    %224 = arith.addf %222, %223 : vector<1x1xf32>
    %c0_178 = arith.constant 0 : index
    %c0_179 = arith.constant 0 : index
    %c0_180 = arith.constant 0 : index
    %225 = vector.load %arg13[%c0_178, %c0_179, %c0_180] : memref<1x1x1xf32, #tpu.memory_space<vmem>>, vector<1x1x1xf32>
    %226 = vector.shape_cast %225 : vector<1x1x1xf32> to vector<1x1xf32>
    %227 = vector.shape_cast %224 : vector<1x1xf32> to vector<1x1x1xf32>
    tpu.vector_store %arg13[%c0_178, %c0_179, %c0_180], %227 {strides = array<i32>} : memref<1x1x1xf32, #tpu.memory_space<vmem>>, vector<1x1x1xf32>,
    return
  }
  func.func @transform_0(%arg0: i32) -> (i32, i32, i32) {
    %c0_i32 = arith.constant 0 : i32
    %c0_i32_0 = arith.constant 0 : i32
    %c0_i32_1 = arith.constant 0 : i32
    return %arg0, %c0_i32, %c0_i32_0 : i32, i32, i32
  }
  func.func @transform_1(%arg0: i32) -> (i32, i32, i32) {
    %c0_i32 = arith.constant 0 : i32
    %c0_i32_0 = arith.constant 0 : i32
    %c0_i32_1 = arith.constant 0 : i32
    %c0_i32_2 = arith.constant 0 : i32
    return %c0_i32, %c0_i32_0, %c0_i32_1 : i32, i32, i32
  }
  func.func @transform_2(%arg0: i32) -> (i32, i32, i32) {
    %c0_i32 = arith.constant 0 : i32
    %c0_i32_0 = arith.constant 0 : i32
    %c0_i32_1 = arith.constant 0 : i32
    %c0_i32_2 = arith.constant 0 : i32
    return %c0_i32, %c0_i32_0, %c0_i32_1 : i32, i32, i32
  }
  func.func @transform_3(%arg0: i32) -> (i32, i32) {
    %c0_i32 = arith.constant 0 : i32
    %c0_i32_0 = arith.constant 0 : i32
    %c0_i32_1 = arith.constant 0 : i32
    return %c0_i32, %c0_i32_0 : i32, i32
  }
  func.func @transform_4(%arg0: i32) -> (i32, i32, i32) {
    %c0_i32 = arith.constant 0 : i32
    %c0_i32_0 = arith.constant 0 : i32
    %c0_i32_1 = arith.constant 0 : i32
    %c0_i32_2 = arith.constant 0 : i32
    return %c0_i32, %c0_i32_0, %c0_i32_1 : i32, i32, i32
  }
  func.func @transform_5(%arg0: i32) -> (i32, i32) {
    %c0_i32 = arith.constant 0 : i32
    %c0_i32_0 = arith.constant 0 : i32
    %c0_i32_1 = arith.constant 0 : i32
    return %c0_i32, %c0_i32_0 : i32, i32
  }
  func.func @transform_6(%arg0: i32) -> (i32, i32, i32) {
    %c0_i32 = arith.constant 0 : i32
    %c0_i32_0 = arith.constant 0 : i32
    %c0_i32_1 = arith.constant 0 : i32
    %c0_i32_2 = arith.constant 0 : i32
    return %c0_i32, %c0_i32_0, %c0_i32_1 : i32, i32, i32
  }
  func.func @transform_7(%arg0: i32) -> (i32, i32) {
    %c0_i32 = arith.constant 0 : i32
    %c0_i32_0 = arith.constant 0 : i32
    %c0_i32_1 = arith.constant 0 : i32
    return %c0_i32, %c0_i32_0 : i32, i32
  }
  func.func @transform_8(%arg0: i32) -> (i32, i32) {
    %c0_i32 = arith.constant 0 : i32
    %c0_i32_0 = arith.constant 0 : i32
    %c0_i32_1 = arith.constant 0 : i32
    return %c0_i32, %c0_i32_0 : i32, i32
  }
  func.func @transform_9(%arg0: i32) -> (i32, i32) {
    %c0_i32 = arith.constant 0 : i32
    %c0_i32_0 = arith.constant 0 : i32
    %c0_i32_1 = arith.constant 0 : i32
    return %c0_i32, %c0_i32_0 : i32, i32
  }
  func.func @transform_10(%arg0: i32) -> (i32, i32) {
    %c0_i32 = arith.constant 0 : i32
    %c0_i32_0 = arith.constant 0 : i32
    %c0_i32_1 = arith.constant 0 : i32
    return %c0_i32, %c0_i32_0 : i32, i32
  }
  func.func @transform_11(%arg0: i32) -> (i32, i32) {
    %c0_i32 = arith.constant 0 : i32
    %c0_i32_0 = arith.constant 0 : i32
    %c0_i32_1 = arith.constant 0 : i32
    return %c0_i32, %c0_i32_0 : i32, i32
  }
  func.func @transform_12(%arg0: i32) -> (i32, i32, i32) {
    %c0_i32 = arith.constant 0 : i32
    %c0_i32_0 = arith.constant 0 : i32
    %c0_i32_1 = arith.constant 0 : i32
    return %arg0, %c0_i32, %c0_i32_0 : i32, i32, i32
  }
}

</mosaic_0001>

<llo_original>
// kernel: cnn_forward.1
$region0: #{cnn_forward.1}
  #allocation0 [shape = 'u32[]', space=smem, size = 0x4, offset = 0x4, fixed_abs, tag = 'smem constant byte address 0x4 - core index']
  #allocation1 [shape = 'u32[72,128]{1,0:T(1,128)}', space=vmem, size = 0x9000, scoped, tag = 'internal scratch']
  #allocation2 [shape = 'f32[1,1]{1,0:T(1,128)S(1)}', space=vmem, size = 0x200, scoped, tag = 'scoped memory for cnn_forward.1']
  %s0 = inlined_call_operand.vmem [shape: f32[2,4,256], index: 0, kind: input, shape index: {}]
  %s1 = inlined_call_operand.vmem [shape: f32[9,1,256], index: 1, kind: input, shape index: {}]
  %s2 = inlined_call_operand.vmem [shape: f32[9,8,4], index: 2, kind: input, shape index: {}]
  %s3 = inlined_call_operand.vmem [shape: f32[8,1], index: 3, kind: input, shape index: {}]
  %s4 = inlined_call_operand.vmem [shape: f32[9,8,8], index: 4, kind: input, shape index: {}]
  %s5 = inlined_call_operand.vmem [shape: f32[8,1], index: 5, kind: input, shape index: {}]
  %s6 = inlined_call_operand.vmem [shape: f32[8,256,32], index: 6, kind: input, shape index: {}]
  %s7 = inlined_call_operand.vmem [shape: f32[1,32], index: 7, kind: input, shape index: {}]
  %s8 = inlined_call_operand.vmem [shape: f32[32,32], index: 8, kind: input, shape index: {}]
  %s9 = inlined_call_operand.vmem [shape: f32[1,32], index: 9, kind: input, shape index: {}]
  %s10 = inlined_call_operand.vmem [shape: f32[32,1], index: 10, kind: input, shape index: {}]
  %s11 = inlined_call_operand.<no memory space> [shape: f32[1,1], index: 11, kind: input, shape index: {}]
  %s12 = inlined_call_operand.vmem [shape: f32[2,1,1], index: 12, kind: output, shape index: {}]
  %s13 = sld [smem:[#allocation0]]
  $region81: #{cnn_forward.1} parent=0
    _
  %s15 = ssub.s32 1, %s13
  %s16 = scalar_select 0, %s15, %s13
  %v17 = vstv %s11
  %18 = vst [vmem:[#allocation2] sm:$0x1] %v17
  loop: start=0, step=1, limit=4
  $region2: #{cnn_forward.1} parent=0 // loop_pre_header
    _
  $region3: #{cnn_forward.1} parent=0 // loop_header
    %s20 = sphi 0, %s24
    %p21 = scmp.ge.s32.totalorder %s20, 4
    %s30 = sphi 0, %s32
    %s33 = sphi 0, %s30
    %s34 = sphi 0, %s33
    %s50 = sphi 0, %s34
    %s54 = sphi 0, %s54
    %s56 = sphi 0, %s54
    %s57 = sphi 0, %s56
    %s71 = sphi 0, %s57
    %s75 = sphi 0, %s75
    %s77 = sphi 0, %s75
    %s78 = sphi 0, %s77
    %s92 = sphi 0, %s78
    %s96 = sphi 0, %s96
    %s98 = sphi 0, %s96
    %s99 = sphi 0, %s98
    %s113 = sphi 0, %s99
    %s117 = sphi 0, %s117
    %s119 = sphi 0, %s117
    %s120 = sphi 0, %s119
    %s134 = sphi 0, %s120
    %s138 = sphi 0, %s138
    %s140 = sphi 0, %s138
    %s141 = sphi 0, %s140
    %s155 = sphi 0, %s141
    %s159 = sphi 0, %s159
    %s161 = sphi 0, %s159
    %s162 = sphi 0, %s161
    %s176 = sphi 0, %s162
    %s180 = sphi 0, %s180
    %s182 = sphi 0, %s180
    %s183 = sphi 0, %s182
    %s197 = sphi 0, %s183
    %s201 = sphi 0, %s201
    %s203 = sphi 0, %s201
    %s204 = sphi 0, %s203
    %s218 = sphi 0, %s204
    %s222 = sphi 0, %s222
    %s224 = sphi 0, %s222
    %s225 = sphi 0, %s224
    %s239 = sphi 0, %s225
    %s243 = sphi 0, %s243
    %s245 = sphi 0, %s243
    %s246 = sphi 0, %s245
    %s260 = sphi 0, %s246
    %s264 = sphi 0, %s264
    %s266 = sphi 0, %s264
    %s267 = sphi 0, %s266
    %s281 = sphi 0, %s267
    %s287 = sphi 0, %s289
    %s290 = sphi 0, %s287
    %s291 = sphi 0, %s290
    %s307 = sphi 0, %s291
  $region4: #{cnn_forward.1} parent=0 // loop_header_branch
    %23 = sbr.rel (%p21) target = $region8
  $region5: #{cnn_forward.1} parent=0 // loop_body
    %s25 = ssub.s32 %s20, 1
    %s26 = ssub.s32 %s20, 2
    %s27 = sadd.s32 %s20, 1
    %s28 = ssub.s32 %s20, %s27
    %p29 = scmp.eq.s32.totalorder %s28, 0
    %s31 = sadd.s32 %s30, 1
    %s32 = scalar_select %p29, %s30, %s31
    %p35 = pneg %p29
    %p36 = scmp.eq.s32.totalorder %s20, 1
    %p37 = por %p35, %p36
    %p38 = scmp.ne.s32.totalorder %s30, %s33
    %p39 = scmp.eq.s32.totalorder %s20, 0
    %p40 = por %p38, %p39
    %p41 = scmp.ne.s32.totalorder %s30, %s33
    %p42 = scmp.eq.s32.totalorder %s25, 1
    %p43 = por %p41, %p42
    %p44 = scmp.ne.s32.totalorder %s33, %s34
    %p45 = scmp.eq.s32.totalorder %s25, 0
    %p46 = por %p44, %p45
    %p47 = scmp.ne.s32.totalorder %s33, %s34
    %p48 = scmp.eq.s32.totalorder %s26, 1
    %p49 = por %p47, %p48
    %p51 = scmp.ne.s32.totalorder %s34, %s50
    %p52 = scmp.eq.s32.totalorder %s26, 0
    %p53 = por %p51, %p52
    %s55 = sadd.s32 %s54, 1
    %p58 = scmp.eq.s32.totalorder %s20, 1
    %p59 = scmp.ne.s32.totalorder %s54, %s56
    %p60 = scmp.eq.s32.totalorder %s20, 0
    %p61 = por %p59, %p60
    %p62 = scmp.ne.s32.totalorder %s54, %s56
    %p63 = scmp.eq.s32.totalorder %s25, 1
    %p64 = por %p62, %p63
    %p65 = scmp.ne.s32.totalorder %s56, %s57
    %p66 = scmp.eq.s32.totalorder %s25, 0
    %p67 = por %p65, %p66
    %p68 = scmp.ne.s32.totalorder %s56, %s57
    %p69 = scmp.eq.s32.totalorder %s26, 1
    %p70 = por %p68, %p69
    %p72 = scmp.ne.s32.totalorder %s57, %s71
    %p73 = scmp.eq.s32.totalorder %s26, 0
    %p74 = por %p72, %p73
    %s76 = sadd.s32 %s75, 1
    %p79 = scmp.eq.s32.totalorder %s20, 1
    %p80 = scmp.ne.s32.totalorder %s75, %s77
    %p81 = scmp.eq.s32.totalorder %s20, 0
    %p82 = por %p80, %p81
    %p83 = scmp.ne.s32.totalorder %s75, %s77
    %p84 = scmp.eq.s32.totalorder %s25, 1
    %p85 = por %p83, %p84
    %p86 = scmp.ne.s32.totalorder %s77, %s78
    %p87 = scmp.eq.s32.totalorder %s25, 0
    %p88 = por %p86, %p87
    %p89 = scmp.ne.s32.totalorder %s77, %s78
    %p90 = scmp.eq.s32.totalorder %s26, 1
    %p91 = por %p89, %p90
    %p93 = scmp.ne.s32.totalorder %s78, %s92
    %p94 = scmp.eq.s32.totalorder %s26, 0
    %p95 = por %p93, %p94
    %s97 = sadd.s32 %s96, 1
    %p100 = scmp.eq.s32.totalorder %s20, 1
    %p101 = scmp.ne.s32.totalorder %s96, %s98
    %p102 = scmp.eq.s32.totalorder %s20, 0
    %p103 = por %p101, %p102
    %p104 = scmp.ne.s32.totalorder %s96, %s98
    %p105 = scmp.eq.s32.totalorder %s25, 1
    %p106 = por %p104, %p105
    %p107 = scmp.ne.s32.totalorder %s98, %s99
    %p108 = scmp.eq.s32.totalorder %s25, 0
    %p109 = por %p107, %p108
    %p110 = scmp.ne.s32.totalorder %s98, %s99
    %p111 = scmp.eq.s32.totalorder %s26, 1
    %p112 = por %p110, %p111
    %p114 = scmp.ne.s32.totalorder %s99, %s113
    %p115 = scmp.eq.s32.totalorder %s26, 0
    %p116 = por %p114, %p115
    %s118 = sadd.s32 %s117, 1
    %p121 = scmp.eq.s32.totalorder %s20, 1
    %p122 = scmp.ne.s32.totalorder %s117, %s119
    %p123 = scmp.eq.s32.totalorder %s20, 0
    %p124 = por %p122, %p123
    %p125 = scmp.ne.s32.totalorder %s117, %s119
    %p126 = scmp.eq.s32.totalorder %s25, 1
    %p127 = por %p125, %p126
    %p128 = scmp.ne.s32.totalorder %s119, %s120
    %p129 = scmp.eq.s32.totalorder %s25, 0
    %p130 = por %p128, %p129
    %p131 = scmp.ne.s32.totalorder %s119, %s120
    %p132 = scmp.eq.s32.totalorder %s26, 1
    %p133 = por %p131, %p132
    %p135 = scmp.ne.s32.totalorder %s120, %s134
    %p136 = scmp.eq.s32.totalorder %s26, 0
    %p137 = por %p135, %p136
    %s139 = sadd.s32 %s138, 1
    %p142 = scmp.eq.s32.totalorder %s20, 1
    %p143 = scmp.ne.s32.totalorder %s138, %s140
    %p144 = scmp.eq.s32.totalorder %s20, 0
    %p145 = por %p143, %p144
    %p146 = scmp.ne.s32.totalorder %s138, %s140
    %p147 = scmp.eq.s32.totalorder %s25, 1
    %p148 = por %p146, %p147
    %p149 = scmp.ne.s32.totalorder %s140, %s141
    %p150 = scmp.eq.s32.totalorder %s25, 0
    %p151 = por %p149, %p150
    %p152 = scmp.ne.s32.totalorder %s140, %s141
    %p153 = scmp.eq.s32.totalorder %s26, 1
    %p154 = por %p152, %p153
    %p156 = scmp.ne.s32.totalorder %s141, %s155
    %p157 = scmp.eq.s32.totalorder %s26, 0
    %p158 = por %p156, %p157
    %s160 = sadd.s32 %s159, 1
    %p163 = scmp.eq.s32.totalorder %s20, 1
    %p164 = scmp.ne.s32.totalorder %s159, %s161
    %p165 = scmp.eq.s32.totalorder %s20, 0
    %p166 = por %p164, %p165
    %p167 = scmp.ne.s32.totalorder %s159, %s161
    %p168 = scmp.eq.s32.totalorder %s25, 1
    %p169 = por %p167, %p168
    %p170 = scmp.ne.s32.totalorder %s161, %s162
    %p171 = scmp.eq.s32.totalorder %s25, 0
    %p172 = por %p170, %p171
    %p173 = scmp.ne.s32.totalorder %s161, %s162
    %p174 = scmp.eq.s32.totalorder %s26, 1
    %p175 = por %p173, %p174
    %p177 = scmp.ne.s32.totalorder %s162, %s176
    %p178 = scmp.eq.s32.totalorder %s26, 0
    %p179 = por %p177, %p178
    %s181 = sadd.s32 %s180, 1
    %p184 = scmp.eq.s32.totalorder %s20, 1
    %p185 = scmp.ne.s32.totalorder %s180, %s182
    %p186 = scmp.eq.s32.totalorder %s20, 0
    %p187 = por %p185, %p186
    %p188 = scmp.ne.s32.totalorder %s180, %s182
    %p189 = scmp.eq.s32.totalorder %s25, 1
    %p190 = por %p188, %p189
    %p191 = scmp.ne.s32.totalorder %s182, %s183
    %p192 = scmp.eq.s32.totalorder %s25, 0
    %p193 = por %p191, %p192
    %p194 = scmp.ne.s32.totalorder %s182, %s183
    %p195 = scmp.eq.s32.totalorder %s26, 1
    %p196 = por %p194, %p195
    %p198 = scmp.ne.s32.totalorder %s183, %s197
    %p199 = scmp.eq.s32.totalorder %s26, 0
    %p200 = por %p198, %p199
    %s202 = sadd.s32 %s201, 1
    %p205 = scmp.eq.s32.totalorder %s20, 1
    %p206 = scmp.ne.s32.totalorder %s201, %s203
    %p207 = scmp.eq.s32.totalorder %s20, 0
    %p208 = por %p206, %p207
    %p209 = scmp.ne.s32.totalorder %s201, %s203
    %p210 = scmp.eq.s32.totalorder %s25, 1
    %p211 = por %p209, %p210
    %p212 = scmp.ne.s32.totalorder %s203, %s204
    %p213 = scmp.eq.s32.totalorder %s25, 0
    %p214 = por %p212, %p213
    %p215 = scmp.ne.s32.totalorder %s203, %s204
    %p216 = scmp.eq.s32.totalorder %s26, 1
    %p217 = por %p215, %p216
    %p219 = scmp.ne.s32.totalorder %s204, %s218
    %p220 = scmp.eq.s32.totalorder %s26, 0
    %p221 = por %p219, %p220
    %s223 = sadd.s32 %s222, 1
    %p226 = scmp.eq.s32.totalorder %s20, 1
    %p227 = scmp.ne.s32.totalorder %s222, %s224
    %p228 = scmp.eq.s32.totalorder %s20, 0
    %p229 = por %p227, %p228
    %p230 = scmp.ne.s32.totalorder %s222, %s224
    %p231 = scmp.eq.s32.totalorder %s25, 1
    %p232 = por %p230, %p231
    %p233 = scmp.ne.s32.totalorder %s224, %s225
    %p234 = scmp.eq.s32.totalorder %s25, 0
    %p235 = por %p233, %p234
    %p236 = scmp.ne.s32.totalorder %s224, %s225
    %p237 = scmp.eq.s32.totalorder %s26, 1
    %p238 = por %p236, %p237
    %p240 = scmp.ne.s32.totalorder %s225, %s239
    %p241 = scmp.eq.s32.totalorder %s26, 0
    %p242 = por %p240, %p241
    %s244 = sadd.s32 %s243, 1
    %p247 = scmp.eq.s32.totalorder %s20, 1
    %p248 = scmp.ne.s32.totalorder %s243, %s245
    %p249 = scmp.eq.s32.totalorder %s20, 0
    %p250 = por %p248, %p249
    %p251 = scmp.ne.s32.totalorder %s243, %s245
    %p252 = scmp.eq.s32.totalorder %s25, 1
    %p253 = por %p251, %p252
    %p254 = scmp.ne.s32.totalorder %s245, %s246
    %p255 = scmp.eq.s32.totalorder %s25, 0
    %p256 = por %p254, %p255
    %p257 = scmp.ne.s32.totalorder %s245, %s246
    %p258 = scmp.eq.s32.totalorder %s26, 1
    %p259 = por %p257, %p258
    %p261 = scmp.ne.s32.totalorder %s246, %s260
    %p262 = scmp.eq.s32.totalorder %s26, 0
    %p263 = por %p261, %p262
    %s265 = sadd.s32 %s264, 1
    %p268 = scmp.eq.s32.totalorder %s20, 1
    %p269 = scmp.ne.s32.totalorder %s264, %s266
    %p270 = scmp.eq.s32.totalorder %s20, 0
    %p271 = por %p269, %p270
    %p272 = scmp.ne.s32.totalorder %s264, %s266
    %p273 = scmp.eq.s32.totalorder %s25, 1
    %p274 = por %p272, %p273
    %p275 = scmp.ne.s32.totalorder %s266, %s267
    %p276 = scmp.eq.s32.totalorder %s25, 0
    %p277 = por %p275, %p276
    %p278 = scmp.ne.s32.totalorder %s266, %s267
    %p279 = scmp.eq.s32.totalorder %s26, 1
    %p280 = por %p278, %p279
    %p282 = scmp.ne.s32.totalorder %s267, %s281
    %p283 = scmp.eq.s32.totalorder %s26, 0
    %p284 = por %p282, %p283
    %s285 = ssub.s32 %s20, %s27
    %p286 = scmp.eq.s32.totalorder %s285, 0
    %s288 = sadd.s32 %s287, 1
    %s289 = scalar_select %p286, %s287, %s288
    %p292 = pneg %p286
    %p293 = scmp.eq.s32.totalorder %s20, 1
    %p294 = por %p292, %p293
    %p295 = scmp.ne.s32.totalorder %s287, %s290
    %p296 = scmp.eq.s32.totalorder %s20, 0
    %p297 = por %p295, %p296
    %p298 = scmp.ne.s32.totalorder %s287, %s290
    %p299 = scmp.eq.s32.totalorder %s25, 1
    %p300 = por %p298, %p299
    %p301 = scmp.ne.s32.totalorder %s290, %s291
    %p302 = scmp.eq.s32.totalorder %s25, 0
    %p303 = por %p301, %p302
    %p304 = scmp.ne.s32.totalorder %s290, %s291
    %p305 = scmp.eq.s32.totalorder %s26, 1
    %p306 = por %p304, %p305
    %p308 = scmp.ne.s32.totalorder %s291, %s307
    %p309 = scmp.eq.s32.totalorder %s26, 0
    %p310 = por %p308, %p309
    %p311 = scmp.le.s32.totalorder 1, %s20
    %p312 = scmp.lt.s32.totalorder %s20, 3
    %p313 = pnand %p311, %p312
    %p314 = pneg %p313
    // Predicated region
    $region9: #{cnn_forward.1} parent=5 // pred_check
      _
    $region10: #{cnn_forward.1} parent=5 // pred_check_branch
      %316 = sbr.rel (%p313) target = $region12
    $region11: #{cnn_forward.1} parent=5 // pred_region
      %s317 = ssub.s32 %s20, 1
      // Predicated region
      $region13: #{cnn_forward.1} parent=11 // pred_check
        %p318 = pneg %p67
      $region14: #{cnn_forward.1} parent=11 // pred_check_branch
        %320 = sbr.rel (%p318) target = $region16
      $region15: #{cnn_forward.1} parent=11 // pred_region
        _
      $region16: #{cnn_forward.1} parent=11 // pred_fallthru
        _
      // Predicated region
      $region17: #{cnn_forward.1} parent=11 // pred_check
        %p321 = pneg %p88
      $region18: #{cnn_forward.1} parent=11 // pred_check_branch
        %323 = sbr.rel (%p321) target = $region20
      $region19: #{cnn_forward.1} parent=11 // pred_region
        _
      $region20: #{cnn_forward.1} parent=11 // pred_fallthru
        _
      // Predicated region
      $region21: #{cnn_forward.1} parent=11 // pred_check
        %p324 = pneg %p109
      $region22: #{cnn_forward.1} parent=11 // pred_check_branch
        %326 = sbr.rel (%p324) target = $region24
      $region23: #{cnn_forward.1} parent=11 // pred_region
        _
      $region24: #{cnn_forward.1} parent=11 // pred_fallthru
        _
      // Predicated region
      $region25: #{cnn_forward.1} parent=11 // pred_check
        %p327 = pneg %p130
      $region26: #{cnn_forward.1} parent=11 // pred_check_branch
        %329 = sbr.rel (%p327) target = $region28
      $region27: #{cnn_forward.1} parent=11 // pred_region
        _
      $region28: #{cnn_forward.1} parent=11 // pred_fallthru
        _
      // Predicated region
      $region29: #{cnn_forward.1} parent=11 // pred_check
        %p330 = pneg %p151
      $region30: #{cnn_forward.1} parent=11 // pred_check_branch
        %332 = sbr.rel (%p330) target = $region32
      $region31: #{cnn_forward.1} parent=11 // pred_region
        _
      $region32: #{cnn_forward.1} parent=11 // pred_fallthru
        _
      // Predicated region
      $region33: #{cnn_forward.1} parent=11 // pred_check
        %p333 = pneg %p172
      $region34: #{cnn_forward.1} parent=11 // pred_check_branch
        %335 = sbr.rel (%p333) target = $region36
      $region35: #{cnn_forward.1} parent=11 // pred_region
        _
      $region36: #{cnn_forward.1} parent=11 // pred_fallthru
        _
      // Predicated region
      $region37: #{cnn_forward.1} parent=11 // pred_check
        %p336 = pneg %p193
      $region38: #{cnn_forward.1} parent=11 // pred_check_branch
        %338 = sbr.rel (%p336) target = $region40
      $region39: #{cnn_forward.1} parent=11 // pred_region
        _
      $region40: #{cnn_forward.1} parent=11 // pred_fallthru
        _
      // Predicated region
      $region41: #{cnn_forward.1} parent=11 // pred_check
        %p339 = pneg %p214
      $region42: #{cnn_forward.1} parent=11 // pred_check_branch
        %341 = sbr.rel (%p339) target = $region44
      $region43: #{cnn_forward.1} parent=11 // pred_region
        _
      $region44: #{cnn_forward.1} parent=11 // pred_fallthru
        _
      // Predicated region
      $region45: #{cnn_forward.1} parent=11 // pred_check
        %p342 = pneg %p235
      $region46: #{cnn_forward.1} parent=11 // pred_check_branch
        %344 = sbr.rel (%p342) target = $region48
      $region47: #{cnn_forward.1} parent=11 // pred_region
        _
      $region48: #{cnn_forward.1} parent=11 // pred_fallthru
        _
      // Predicated region
      $region49: #{cnn_forward.1} parent=11 // pred_check
        %p345 = pneg %p256
      $region50: #{cnn_forward.1} parent=11 // pred_check_branch
        %347 = sbr.rel (%p345) target = $region52
      $region51: #{cnn_forward.1} parent=11 // pred_region
        _
      $region52: #{cnn_forward.1} parent=11 // pred_fallthru
        _
      // Predicated region
      $region53: #{cnn_forward.1} parent=11 // pred_check
        %p348 = pneg %p277
      $region54: #{cnn_forward.1} parent=11 // pred_check_branch
        %350 = sbr.rel (%p348) target = $region56
      $region55: #{cnn_forward.1} parent=11 // pred_region
        _
      $region56: #{cnn_forward.1} parent=11 // pred_fallthru
        _
    $region12: #{cnn_forward.1} parent=5 // pred_fallthru
      _
    %p351 = scmp.lt.s32.totalorder %s20, 2
    // Predicated region
    $region57: #{cnn_forward.1} parent=5 // pred_check
      %p352 = pneg %p351
    $region58: #{cnn_forward.1} parent=5 // pred_check_branch
      %354 = sbr.rel (%p352) target = $region60
    $region59: #{cnn_forward.1} parent=5 // pred_region
      // Predicated region
      $region61: #{cnn_forward.1} parent=59 // pred_check
        %p355 = pneg %p40
      $region62: #{cnn_forward.1} parent=59 // pred_check_branch
        %357 = sbr.rel (%p355) target = $region64
      $region63: #{cnn_forward.1} parent=59 // pred_region
        %p358 = scmp.lt.s32.totalorder %s20, 1
        %s359 = scalar_select %p358, %s20, 1
        %s360 = smul.addr %s359, 2
        %s361 = smul.addr %s360, 4
        %s362 = scalar_lea.vmem %s0, %s361
      $region64: #{cnn_forward.1} parent=59 // pred_fallthru
        _
    $region60: #{cnn_forward.1} parent=5 // pred_fallthru
      _
    %p363 = scmp.le.s32.totalorder 1, %s20
    %p364 = scmp.lt.s32.totalorder %s20, 3
    %p365 = pnand %p363, %p364
    %p366 = pneg %p365
    // Predicated region
    $region65: #{cnn_forward.1} parent=5 // pred_check
      _
    $region66: #{cnn_forward.1} parent=5 // pred_check_branch
      %368 = sbr.rel (%p365) target = $region68
    $region67: #{cnn_forward.1} parent=5 // pred_region
      %s369 = ssub.s32 %s20, 1
      %p370 = scmp.lt.s32.totalorder %s25, 1
      %s371 = scalar_select %p370, %s25, 1
      %s372 = smul.addr %s371, 2
      %s373 = smul.addr %s372, 4
      %s374 = scalar_lea.vmem %s0, %s373
      %p375 = pneg %p46
      %p376 = pneg %p43
      %p377 = pneg %p67
      %p378 = pneg %p64
      %p379 = pneg %p88
      %p380 = pneg %p85
      %p381 = pneg %p109
      %p382 = pneg %p106
      %p383 = pneg %p130
      %p384 = pneg %p127
      %p385 = pneg %p151
      %p386 = pneg %p148
      %p387 = pneg %p172
      %p388 = pneg %p169
      %p389 = pneg %p193
      %p390 = pneg %p190
      %p391 = pneg %p214
      %p392 = pneg %p211
      %p393 = pneg %p235
      %p394 = pneg %p232
      %p395 = pneg %p256
      %p396 = pneg %p253
      %p397 = pneg %p277
      %p398 = pneg %p274
      %p399 = pneg %p303
      %p400 = pneg %p300
      %p401 = scmp.lt.s32.totalorder %s25, 1
      %s402 = scalar_select %p401, %s25, 1
      %s403 = scalar_lea.vmem %s12, %s402
      %p404 = scmp.lt.s32.totalorder %s25, 1
      %s405 = scalar_select %p404, %s25, 1
      %s406 = smul.addr %s405, 2
      %s407 = smul.addr %s406, 4
      %s408 = scalar_lea.vmem %s0, %s407
      %p409 = scmp.lt.s32.totalorder %s25, 1
      %s410 = scalar_select %p409, %s25, 1
      %s411 = scalar_lea.vmem %s12, %s410
      %v412 = vld [vmem:[%s408] sm:$0xff]
      %414 = vst [vmem:[#allocation1] ss:$2 sm:$0xff] %v412
      %v415 = vld.sshfl [vmem:[#allocation1] sm:$0xff pattern:$0x75316420]
      %v416 = vld.sshfl [vmem:[#allocation1 + $0x8] sm:$0xff pattern:$0x75316420]
      %419 = vrot.lane.b32.xlu0 %v415, 17
      %v420 = vpop.permute.xlu0 %419
      %421 = vrot.lane.b32.xlu0 %v416, 17
      %v422 = vpop.permute.xlu0 %421
      %v423 = vlaneseq
      %v424 = vand.u32 %v423, 127
      %vm425 = vcmp.lt.s32.totalorder %v424, 17
      %v426 = vsel %vm425, %v420, %v422
      %v427 = vsel %vm425, %v422, %v420
      %v428 = vld [vmem:[%s1] sm:$0x3]
      %v430 = vperm.slane %v428, 0
      %v431 = vperm.slane %v428, 1
      %v434 = vmul.f32 %v427, %v430
      %v435 = vmul.f32 %v426, %v431
      %v436 = vld [vmem:[%s2] sm:$0xff]
      %437 = vst [vmem:[#allocation1] ss:$2 sm:$0xff] %v412
      %v438 = vld.sshfl [vmem:[#allocation1] sm:$0xff pattern:$0x75316420]
      %v439 = vld.sshfl [vmem:[#allocation1 + $0x8] sm:$0xff pattern:$0x75316420]
      %442 = vrot.lane.b32.xlu0 %v438, 16
      %v443 = vpop.permute.xlu0 %442
      %444 = vrot.lane.b32.xlu0 %v439, 16
      %v445 = vpop.permute.xlu0 %444
      %vm446 = vcmp.lt.s32.totalorder %v424, 16
      %v447 = vsel %vm446, %v443, %v445
      %v448 = vsel %vm446, %v445, %v443
      %s449 = scalar_lea.vmem %s1, 2
      %v450 = vld [vmem:[%s449] sm:$0x3]
      %v452 = vperm.slane %v450, 0
      %v453 = vperm.slane %v450, 1
      %v456 = vmul.f32 %v448, %v452
      %v457 = vmul.f32 %v447, %v453
      %s458 = scalar_lea.vmem %s2, 8
      %v459 = vld [vmem:[%s458] sm:$0xff]
      %vm460 = vcmask 31744
      %v462 = vsel %vm460, %v459, 0
      %vm464 = vcmask 1043456
      %v466 = vsel %vm464, %v456, 0
      %v469 = vsel %vm464, %v457, 0
      %471 = vmatpush.msra.mxu0 0.0
      %472 = vmatpush.msra.mxu0 0.0
      %473 = vmatpush.msra.mxu0 0.0
      %474 = vmatpush.msra.mxu0 0.0
      %475 = vmatpush.msra.mxu0 0.0
      %476 = vmatpush.msra.mxu0 0.0
      %477 = vmatpush.msra.mxu0 0.0
      %478 = vmatpush.msra.mxu0 0.0
      %479 = vmatpush.msra.mxu0 0.0
      %480 = vmatpush.msra.mxu0 0.0
      %481 = vmatpush.msra.mxu0 0.0
      %482 = vmatpush.msra.mxu0 0.0
      %483 = vmatpush.msra.mxu0 0.0
      %484 = vmatpush.msra.mxu0 0.0
      %485 = vmatpush.msra.mxu0 0.0
      %486 = vmatpush.msra.mxu0 %v466
      %487 = vmatmul.f32.gmra.mxu0 %v462
      %v488 = vpop.f32.mrf.mxu0
      %v489 = vadd.f32 0.0, %v488
      %490 = vdwg.mxu0
      %491 = vmatpush.msra.mxu0 0.0
      %492 = vmatpush.msra.mxu0 0.0
      %493 = vmatpush.msra.mxu0 0.0
      %494 = vmatpush.msra.mxu0 0.0
      %495 = vmatpush.msra.mxu0 0.0
      %496 = vmatpush.msra.mxu0 0.0
      %497 = vmatpush.msra.mxu0 0.0
      %498 = vmatpush.msra.mxu0 0.0
      %499 = vmatpush.msra.mxu0 0.0
      %500 = vmatpush.msra.mxu0 0.0
      %501 = vmatpush.msra.mxu0 0.0
      %502 = vmatpush.msra.mxu0 0.0
      %503 = vmatpush.msra.mxu0 0.0
      %504 = vmatpush.msra.mxu0 0.0
      %505 = vmatpush.msra.mxu0 0.0
      %506 = vmatpush.msra.mxu0 %v469
      %507 = vmatmul.f32.gmra.mxu0 %v462
      %v508 = vpop.f32.mrf.mxu0
      %v509 = vadd.f32 0.0, %v508
      %510 = vdwg.mxu0
      %v512 = vsel %vm460, %v436, 0
      %v515 = vsel %vm464, %v434, 0
      %v518 = vsel %vm464, %v435, 0
      %520 = vmatpush.msra.mxu0 0.0
      %521 = vmatpush.msra.mxu0 0.0
      %522 = vmatpush.msra.mxu0 0.0
      %523 = vmatpush.msra.mxu0 0.0
      %524 = vmatpush.msra.mxu0 0.0
      %525 = vmatpush.msra.mxu0 0.0
      %526 = vmatpush.msra.mxu0 0.0
      %527 = vmatpush.msra.mxu0 0.0
      %528 = vmatpush.msra.mxu0 0.0
      %529 = vmatpush.msra.mxu0 0.0
      %530 = vmatpush.msra.mxu0 0.0
      %531 = vmatpush.msra.mxu0 0.0
      %532 = vmatpush.msra.mxu0 0.0
      %533 = vmatpush.msra.mxu0 0.0
      %534 = vmatpush.msra.mxu0 0.0
      %535 = vmatpush.msra.mxu0 %v515
      %536 = vmatmul.f32.gmra.mxu0 %v512
      %v537 = vpop.f32.mrf.mxu0
      %v538 = vadd.f32 %v489, %v537
      %539 = vdwg.mxu0
      %540 = vmatpush.msra.mxu0 0.0
      %541 = vmatpush.msra.mxu0 0.0
      %542 = vmatpush.msra.mxu0 0.0
      %543 = vmatpush.msra.mxu0 0.0
      %544 = vmatpush.msra.mxu0 0.0
      %545 = vmatpush.msra.mxu0 0.0
      %546 = vmatpush.msra.mxu0 0.0
      %547 = vmatpush.msra.mxu0 0.0
      %548 = vmatpush.msra.mxu0 0.0
      %549 = vmatpush.msra.mxu0 0.0
      %550 = vmatpush.msra.mxu0 0.0
      %551 = vmatpush.msra.mxu0 0.0
      %552 = vmatpush.msra.mxu0 0.0
      %553 = vmatpush.msra.mxu0 0.0
      %554 = vmatpush.msra.mxu0 0.0
      %555 = vmatpush.msra.mxu0 %v518
      %556 = vmatmul.f32.gmra.mxu0 %v512
      %v557 = vpop.f32.mrf.mxu0
      %v558 = vadd.f32 %v509, %v557
      %559 = vdwg.mxu0
      %560 = vst [vmem:[#allocation1] ss:$2 sm:$0xff] %v412
      %v561 = vld.sshfl [vmem:[#allocation1] sm:$0xff pattern:$0x75316420]
      %v562 = vld.sshfl [vmem:[#allocation1 + $0x8] sm:$0xff pattern:$0x75316420]
      %565 = vrot.lane.b32.xlu0 %v561, 15
      %v566 = vpop.permute.xlu0 %565
      %567 = vrot.lane.b32.xlu0 %v562, 15
      %v568 = vpop.permute.xlu0 %567
      %vm569 = vcmp.lt.s32.totalorder %v424, 15
      %v570 = vsel %vm569, %v566, %v568
      %v571 = vsel %vm569, %v568, %v566
      %s572 = scalar_lea.vmem %s1, 4
      %v573 = vld [vmem:[%s572] sm:$0x3]
      %v575 = vperm.slane %v573, 0
      %v576 = vperm.slane %v573, 1
      %v579 = vmul.f32 %v571, %v575
      %v580 = vmul.f32 %v570, %v576
      %s581 = scalar_lea.vmem %s2, 16
      %v582 = vld [vmem:[%s581] sm:$0xff]
      %v584 = vsel %vm460, %v582, 0
      %v587 = vsel %vm464, %v579, 0
      %v590 = vsel %vm464, %v580, 0
      %592 = vmatpush.msra.mxu0 0.0
      %593 = vmatpush.msra.mxu0 0.0
      %594 = vmatpush.msra.mxu0 0.0
      %595 = vmatpush.msra.mxu0 0.0
      %596 = vmatpush.msra.mxu0 0.0
      %597 = vmatpush.msra.mxu0 0.0
      %598 = vmatpush.msra.mxu0 0.0
      %599 = vmatpush.msra.mxu0 0.0
      %600 = vmatpush.msra.mxu0 0.0
      %601 = vmatpush.msra.mxu0 0.0
      %602 = vmatpush.msra.mxu0 0.0
      %603 = vmatpush.msra.mxu0 0.0
      %604 = vmatpush.msra.mxu0 0.0
      %605 = vmatpush.msra.mxu0 0.0
      %606 = vmatpush.msra.mxu0 0.0
      %607 = vmatpush.msra.mxu0 %v587
      %608 = vmatmul.f32.gmra.mxu0 %v584
      %v609 = vpop.f32.mrf.mxu0
      %v610 = vadd.f32 0.0, %v609
      %611 = vdwg.mxu0
      %612 = vmatpush.msra.mxu0 0.0
      %613 = vmatpush.msra.mxu0 0.0
      %614 = vmatpush.msra.mxu0 0.0
      %615 = vmatpush.msra.mxu0 0.0
      %616 = vmatpush.msra.mxu0 0.0
      %617 = vmatpush.msra.mxu0 0.0
      %618 = vmatpush.msra.mxu0 0.0
      %619 = vmatpush.msra.mxu0 0.0
      %620 = vmatpush.msra.mxu0 0.0
      %621 = vmatpush.msra.mxu0 0.0
      %622 = vmatpush.msra.mxu0 0.0
      %623 = vmatpush.msra.mxu0 0.0
      %624 = vmatpush.msra.mxu0 0.0
      %625 = vmatpush.msra.mxu0 0.0
      %626 = vmatpush.msra.mxu0 0.0
      %627 = vmatpush.msra.mxu0 %v590
      %628 = vmatmul.f32.gmra.mxu0 %v584
      %v629 = vpop.f32.mrf.mxu0
      %v630 = vadd.f32 0.0, %v629
      %631 = vdwg.mxu0
      %v632 = vadd.f32 %v538, %v610
      %v633 = vadd.f32 %v558, %v630
      %634 = vst [vmem:[#allocation1] ss:$2 sm:$0xff] %v412
      %v635 = vld.sshfl [vmem:[#allocation1] sm:$0xff pattern:$0x75316420]
      %v636 = vld.sshfl [vmem:[#allocation1 + $0x8] sm:$0xff pattern:$0x75316420]
      %639 = vrot.lane.b32.xlu0 %v635, 1
      %v640 = vpop.permute.xlu0 %639
      %641 = vrot.lane.b32.xlu0 %v636, 1
      %v642 = vpop.permute.xlu0 %641
      %vm643 = vcmp.lt.s32.totalorder %v424, 1
      %v644 = vsel %vm643, %v640, %v642
      %v645 = vsel %vm643, %v642, %v640
      %s646 = scalar_lea.vmem %s1, 6
      %v647 = vld [vmem:[%s646] sm:$0x3]
      %v649 = vperm.slane %v647, 0
      %v650 = vperm.slane %v647, 1
      %v653 = vmul.f32 %v645, %v649
      %v654 = vmul.f32 %v644, %v650
      %s655 = scalar_lea.vmem %s2, 24
      %v656 = vld [vmem:[%s655] sm:$0xff]
      %v658 = vsel %vm460, %v656, 0
      %v661 = vsel %vm464, %v653, 0
      %v664 = vsel %vm464, %v654, 0
      %666 = vmatpush.msra.mxu0 0.0
      %667 = vmatpush.msra.mxu0 0.0
      %668 = vmatpush.msra.mxu0 0.0
      %669 = vmatpush.msra.mxu0 0.0
      %670 = vmatpush.msra.mxu0 0.0
      %671 = vmatpush.msra.mxu0 0.0
      %672 = vmatpush.msra.mxu0 0.0
      %673 = vmatpush.msra.mxu0 0.0
      %674 = vmatpush.msra.mxu0 0.0
      %675 = vmatpush.msra.mxu0 0.0
      %676 = vmatpush.msra.mxu0 0.0
      %677 = vmatpush.msra.mxu0 0.0
      %678 = vmatpush.msra.mxu0 0.0
      %679 = vmatpush.msra.mxu0 0.0
      %680 = vmatpush.msra.mxu0 0.0
      %681 = vmatpush.msra.mxu0 %v661
      %682 = vmatmul.f32.gmra.mxu0 %v658
      %v683 = vpop.f32.mrf.mxu0
      %v684 = vadd.f32 0.0, %v683
      %685 = vdwg.mxu0
      %686 = vmatpush.msra.mxu0 0.0
      %687 = vmatpush.msra.mxu0 0.0
      %688 = vmatpush.msra.mxu0 0.0
      %689 = vmatpush.msra.mxu0 0.0
      %690 = vmatpush.msra.mxu0 0.0
      %691 = vmatpush.msra.mxu0 0.0
      %692 = vmatpush.msra.mxu0 0.0
      %693 = vmatpush.msra.mxu0 0.0
      %694 = vmatpush.msra.mxu0 0.0
      %695 = vmatpush.msra.mxu0 0.0
      %696 = vmatpush.msra.mxu0 0.0
      %697 = vmatpush.msra.mxu0 0.0
      %698 = vmatpush.msra.mxu0 0.0
      %699 = vmatpush.msra.mxu0 0.0
      %700 = vmatpush.msra.mxu0 0.0
      %701 = vmatpush.msra.mxu0 %v664
      %702 = vmatmul.f32.gmra.mxu0 %v658
      %v703 = vpop.f32.mrf.mxu0
      %v704 = vadd.f32 0.0, %v703
      %705 = vdwg.mxu0
      %v706 = vadd.f32 %v632, %v684
      %v707 = vadd.f32 %v633, %v704
      %s708 = scalar_lea.vmem %s2, 32
      %v709 = vld [vmem:[%s708] sm:$0xff]
      %710 = vst [vmem:[#allocation1] ss:$2 sm:$0xff] %v412
      %v711 = vld.sshfl [vmem:[#allocation1] sm:$0xff pattern:$0x75316420]
      %v712 = vld.sshfl [vmem:[#allocation1 + $0x8] sm:$0xff pattern:$0x75316420]
      %v714 = vsel %vm460, %v709, 0
      %v716 = vsel %vm464, %v711, 0
      %v718 = vsel %vm464, %v712, 0
      %720 = vmatpush.msra.mxu0 0.0
      %721 = vmatpush.msra.mxu0 0.0
      %722 = vmatpush.msra.mxu0 0.0
      %723 = vmatpush.msra.mxu0 0.0
      %724 = vmatpush.msra.mxu0 0.0
      %725 = vmatpush.msra.mxu0 0.0
      %726 = vmatpush.msra.mxu0 0.0
      %727 = vmatpush.msra.mxu0 0.0
      %728 = vmatpush.msra.mxu0 0.0
      %729 = vmatpush.msra.mxu0 0.0
      %730 = vmatpush.msra.mxu0 0.0
      %731 = vmatpush.msra.mxu0 0.0
      %732 = vmatpush.msra.mxu0 0.0
      %733 = vmatpush.msra.mxu0 0.0
      %734 = vmatpush.msra.mxu0 0.0
      %735 = vmatpush.msra.mxu0 %v716
      %736 = vmatmul.f32.gmra.mxu0 %v714
      %v737 = vpop.f32.mrf.mxu0
      %v738 = vadd.f32 0.0, %v737
      %739 = vdwg.mxu0
      %740 = vmatpush.msra.mxu0 0.0
      %741 = vmatpush.msra.mxu0 0.0
      %742 = vmatpush.msra.mxu0 0.0
      %743 = vmatpush.msra.mxu0 0.0
      %744 = vmatpush.msra.mxu0 0.0
      %745 = vmatpush.msra.mxu0 0.0
      %746 = vmatpush.msra.mxu0 0.0
      %747 = vmatpush.msra.mxu0 0.0
      %748 = vmatpush.msra.mxu0 0.0
      %749 = vmatpush.msra.mxu0 0.0
      %750 = vmatpush.msra.mxu0 0.0
      %751 = vmatpush.msra.mxu0 0.0
      %752 = vmatpush.msra.mxu0 0.0
      %753 = vmatpush.msra.mxu0 0.0
      %754 = vmatpush.msra.mxu0 0.0
      %755 = vmatpush.msra.mxu0 %v718
      %756 = vmatmul.f32.gmra.mxu0 %v714
      %v757 = vpop.f32.mrf.mxu0
      %v758 = vadd.f32 0.0, %v757
      %759 = vdwg.mxu0
      %v760 = vadd.f32 %v706, %v738
      %v761 = vadd.f32 %v707, %v758
      %762 = vst [vmem:[#allocation1] ss:$2 sm:$0xff] %v412
      %v763 = vld.sshfl [vmem:[#allocation1] sm:$0xff pattern:$0x75316420]
      %v764 = vld.sshfl [vmem:[#allocation1 + $0x8] sm:$0xff pattern:$0x75316420]
      %767 = vrot.lane.b32.xlu0 %v763, 127
      %v768 = vpop.permute.xlu0 %767
      %769 = vrot.lane.b32.xlu0 %v764, 127
      %v770 = vpop.permute.xlu0 %769
      %vm771 = vcmp.lt.s32.totalorder %v424, 127
      %v772 = vsel %vm771, %v768, %v770
      %v773 = vsel %vm771, %v770, %v768
      %s774 = scalar_lea.vmem %s1, 10
      %v775 = vld [vmem:[%s774] sm:$0x3]
      %v777 = vperm.slane %v775, 0
      %v778 = vperm.slane %v775, 1
      %v781 = vmul.f32 %v772, %v777
      %v782 = vmul.f32 %v773, %v778
      %s783 = scalar_lea.vmem %s2, 40
      %v784 = vld [vmem:[%s783] sm:$0xff]
      %v786 = vsel %vm460, %v784, 0
      %v789 = vsel %vm464, %v781, 0
      %v792 = vsel %vm464, %v782, 0
      %794 = vmatpush.msra.mxu0 0.0
      %795 = vmatpush.msra.mxu0 0.0
      %796 = vmatpush.msra.mxu0 0.0
      %797 = vmatpush.msra.mxu0 0.0
      %798 = vmatpush.msra.mxu0 0.0
      %799 = vmatpush.msra.mxu0 0.0
      %800 = vmatpush.msra.mxu0 0.0
      %801 = vmatpush.msra.mxu0 0.0
      %802 = vmatpush.msra.mxu0 0.0
      %803 = vmatpush.msra.mxu0 0.0
      %804 = vmatpush.msra.mxu0 0.0
      %805 = vmatpush.msra.mxu0 0.0
      %806 = vmatpush.msra.mxu0 0.0
      %807 = vmatpush.msra.mxu0 0.0
      %808 = vmatpush.msra.mxu0 0.0
      %809 = vmatpush.msra.mxu0 %v789
      %810 = vmatmul.f32.gmra.mxu0 %v786
      %v811 = vpop.f32.mrf.mxu0
      %v812 = vadd.f32 0.0, %v811
      %813 = vdwg.mxu0
      %814 = vmatpush.msra.mxu0 0.0
      %815 = vmatpush.msra.mxu0 0.0
      %816 = vmatpush.msra.mxu0 0.0
      %817 = vmatpush.msra.mxu0 0.0
      %818 = vmatpush.msra.mxu0 0.0
      %819 = vmatpush.msra.mxu0 0.0
      %820 = vmatpush.msra.mxu0 0.0
      %821 = vmatpush.msra.mxu0 0.0
      %822 = vmatpush.msra.mxu0 0.0
      %823 = vmatpush.msra.mxu0 0.0
      %824 = vmatpush.msra.mxu0 0.0
      %825 = vmatpush.msra.mxu0 0.0
      %826 = vmatpush.msra.mxu0 0.0
      %827 = vmatpush.msra.mxu0 0.0
      %828 = vmatpush.msra.mxu0 0.0
      %829 = vmatpush.msra.mxu0 %v792
      %830 = vmatmul.f32.gmra.mxu0 %v786
      %v831 = vpop.f32.mrf.mxu0
      %v832 = vadd.f32 0.0, %v831
      %833 = vdwg.mxu0
      %v834 = vadd.f32 %v760, %v812
      %v835 = vadd.f32 %v761, %v832
      %836 = vst [vmem:[#allocation1] ss:$2 sm:$0xff] %v412
      %v837 = vld.sshfl [vmem:[#allocation1] sm:$0xff pattern:$0x75316420]
      %v838 = vld.sshfl [vmem:[#allocation1 + $0x8] sm:$0xff pattern:$0x75316420]
      %841 = vrot.lane.b32.xlu0 %v837, 113
      %v842 = vpop.permute.xlu0 %841
      %843 = vrot.lane.b32.xlu0 %v838, 113
      %v844 = vpop.permute.xlu0 %843
      %vm845 = vcmp.lt.s32.totalorder %v424, 113
      %v846 = vsel %vm845, %v842, %v844
      %v847 = vsel %vm845, %v844, %v842
      %s848 = scalar_lea.vmem %s1, 12
      %v849 = vld [vmem:[%s848] sm:$0x3]
      %v851 = vperm.slane %v849, 0
      %v852 = vperm.slane %v849, 1
      %v855 = vmul.f32 %v846, %v851
      %v856 = vmul.f32 %v847, %v852
      %s857 = scalar_lea.vmem %s2, 48
      %v858 = vld [vmem:[%s857] sm:$0xff]
      %v860 = vsel %vm460, %v858, 0
      %v863 = vsel %vm464, %v855, 0
      %v866 = vsel %vm464, %v856, 0
      %868 = vmatpush.msra.mxu0 0.0
      %869 = vmatpush.msra.mxu0 0.0
      %870 = vmatpush.msra.mxu0 0.0
      %871 = vmatpush.msra.mxu0 0.0
      %872 = vmatpush.msra.mxu0 0.0
      %873 = vmatpush.msra.mxu0 0.0
      %874 = vmatpush.msra.mxu0 0.0
      %875 = vmatpush.msra.mxu0 0.0
      %876 = vmatpush.msra.mxu0 0.0
      %877 = vmatpush.msra.mxu0 0.0
      %878 = vmatpush.msra.mxu0 0.0
      %879 = vmatpush.msra.mxu0 0.0
      %880 = vmatpush.msra.mxu0 0.0
      %881 = vmatpush.msra.mxu0 0.0
      %882 = vmatpush.msra.mxu0 0.0
      %883 = vmatpush.msra.mxu0 %v863
      %884 = vmatmul.f32.gmra.mxu0 %v860
      %v885 = vpop.f32.mrf.mxu0
      %v886 = vadd.f32 0.0, %v885
      %887 = vdwg.mxu0
      %888 = vmatpush.msra.mxu0 0.0
      %889 = vmatpush.msra.mxu0 0.0
      %890 = vmatpush.msra.mxu0 0.0
      %891 = vmatpush.msra.mxu0 0.0
      %892 = vmatpush.msra.mxu0 0.0
      %893 = vmatpush.msra.mxu0 0.0
      %894 = vmatpush.msra.mxu0 0.0
      %895 = vmatpush.msra.mxu0 0.0
      %896 = vmatpush.msra.mxu0 0.0
      %897 = vmatpush.msra.mxu0 0.0
      %898 = vmatpush.msra.mxu0 0.0
      %899 = vmatpush.msra.mxu0 0.0
      %900 = vmatpush.msra.mxu0 0.0
      %901 = vmatpush.msra.mxu0 0.0
      %902 = vmatpush.msra.mxu0 0.0
      %903 = vmatpush.msra.mxu0 %v866
      %904 = vmatmul.f32.gmra.mxu0 %v860
      %v905 = vpop.f32.mrf.mxu0
      %v906 = vadd.f32 0.0, %v905
      %907 = vdwg.mxu0
      %v908 = vadd.f32 %v834, %v886
      %v909 = vadd.f32 %v835, %v906
      %910 = vst [vmem:[#allocation1] ss:$2 sm:$0xff] %v412
      %v911 = vld.sshfl [vmem:[#allocation1] sm:$0xff pattern:$0x75316420]
      %v912 = vld.sshfl [vmem:[#allocation1 + $0x8] sm:$0xff pattern:$0x75316420]
      %915 = vrot.lane.b32.xlu0 %v911, 112
      %v916 = vpop.permute.xlu0 %915
      %917 = vrot.lane.b32.xlu0 %v912, 112
      %v918 = vpop.permute.xlu0 %917
      %vm919 = vcmp.lt.s32.totalorder %v424, 112
      %v920 = vsel %vm919, %v916, %v918
      %v921 = vsel %vm919, %v918, %v916
      %s922 = scalar_lea.vmem %s1, 14
      %v923 = vld [vmem:[%s922] sm:$0x3]
      %v925 = vperm.slane %v923, 0
      %v926 = vperm.slane %v923, 1
      %v929 = vmul.f32 %v920, %v925
      %v930 = vmul.f32 %v921, %v926
      %s931 = scalar_lea.vmem %s2, 56
      %v932 = vld [vmem:[%s931] sm:$0xff]
      %v934 = vsel %vm460, %v932, 0
      %v937 = vsel %vm464, %v929, 0
      %v940 = vsel %vm464, %v930, 0
      %942 = vmatpush.msra.mxu0 0.0
      %943 = vmatpush.msra.mxu0 0.0
      %944 = vmatpush.msra.mxu0 0.0
      %945 = vmatpush.msra.mxu0 0.0
      %946 = vmatpush.msra.mxu0 0.0
      %947 = vmatpush.msra.mxu0 0.0
      %948 = vmatpush.msra.mxu0 0.0
      %949 = vmatpush.msra.mxu0 0.0
      %950 = vmatpush.msra.mxu0 0.0
      %951 = vmatpush.msra.mxu0 0.0
      %952 = vmatpush.msra.mxu0 0.0
      %953 = vmatpush.msra.mxu0 0.0
      %954 = vmatpush.msra.mxu0 0.0
      %955 = vmatpush.msra.mxu0 0.0
      %956 = vmatpush.msra.mxu0 0.0
      %957 = vmatpush.msra.mxu0 %v937
      %958 = vmatmul.f32.gmra.mxu0 %v934
      %v959 = vpop.f32.mrf.mxu0
      %v960 = vadd.f32 0.0, %v959
      %961 = vdwg.mxu0
      %962 = vmatpush.msra.mxu0 0.0
      %963 = vmatpush.msra.mxu0 0.0
      %964 = vmatpush.msra.mxu0 0.0
      %965 = vmatpush.msra.mxu0 0.0
      %966 = vmatpush.msra.mxu0 0.0
      %967 = vmatpush.msra.mxu0 0.0
      %968 = vmatpush.msra.mxu0 0.0
      %969 = vmatpush.msra.mxu0 0.0
      %970 = vmatpush.msra.mxu0 0.0
      %971 = vmatpush.msra.mxu0 0.0
      %972 = vmatpush.msra.mxu0 0.0
      %973 = vmatpush.msra.mxu0 0.0
      %974 = vmatpush.msra.mxu0 0.0
      %975 = vmatpush.msra.mxu0 0.0
      %976 = vmatpush.msra.mxu0 0.0
      %977 = vmatpush.msra.mxu0 %v940
      %978 = vmatmul.f32.gmra.mxu0 %v934
      %v979 = vpop.f32.mrf.mxu0
      %v980 = vadd.f32 0.0, %v979
      %981 = vdwg.mxu0
      %v982 = vadd.f32 %v908, %v960
      %v983 = vadd.f32 %v909, %v980
      %984 = vst [vmem:[#allocation1] ss:$2 sm:$0xff] %v412
      %v985 = vld.sshfl [vmem:[#allocation1] sm:$0xff pattern:$0x75316420]
      %v986 = vld.sshfl [vmem:[#allocation1 + $0x8] sm:$0xff pattern:$0x75316420]
      %989 = vrot.lane.b32.xlu0 %v985, 111
      %v990 = vpop.permute.xlu0 %989
      %991 = vrot.lane.b32.xlu0 %v986, 111
      %v992 = vpop.permute.xlu0 %991
      %vm993 = vcmp.lt.s32.totalorder %v424, 111
      %v994 = vsel %vm993, %v990, %v992
      %v995 = vsel %vm993, %v992, %v990
      %s996 = scalar_lea.vmem %s1, 16
      %v997 = vld [vmem:[%s996] sm:$0x3]
      %v999 = vperm.slane %v997, 0
      %v1000 = vperm.slane %v997, 1
      %v1003 = vmul.f32 %v994, %v999
      %v1004 = vmul.f32 %v995, %v1000
      %s1005 = scalar_lea.vmem %s2, 64
      %v1006 = vld [vmem:[%s1005] sm:$0xff]
      %v1008 = vsel %vm460, %v1006, 0
      %v1011 = vsel %vm464, %v1003, 0
      %v1014 = vsel %vm464, %v1004, 0
      %1016 = vmatpush.msra.mxu0 0.0
      %1017 = vmatpush.msra.mxu0 0.0
      %1018 = vmatpush.msra.mxu0 0.0
      %1019 = vmatpush.msra.mxu0 0.0
      %1020 = vmatpush.msra.mxu0 0.0
      %1021 = vmatpush.msra.mxu0 0.0
      %1022 = vmatpush.msra.mxu0 0.0
      %1023 = vmatpush.msra.mxu0 0.0
      %1024 = vmatpush.msra.mxu0 0.0
      %1025 = vmatpush.msra.mxu0 0.0
      %1026 = vmatpush.msra.mxu0 0.0
      %1027 = vmatpush.msra.mxu0 0.0
      %1028 = vmatpush.msra.mxu0 0.0
      %1029 = vmatpush.msra.mxu0 0.0
      %1030 = vmatpush.msra.mxu0 0.0
      %1031 = vmatpush.msra.mxu0 %v1011
      %1032 = vmatmul.f32.gmra.mxu0 %v1008
      %v1033 = vpop.f32.mrf.mxu0
      %v1034 = vadd.f32 0.0, %v1033
      %1035 = vdwg.mxu0
      %1036 = vmatpush.msra.mxu0 0.0
      %1037 = vmatpush.msra.mxu0 0.0
      %1038 = vmatpush.msra.mxu0 0.0
      %1039 = vmatpush.msra.mxu0 0.0
      %1040 = vmatpush.msra.mxu0 0.0
      %1041 = vmatpush.msra.mxu0 0.0
      %1042 = vmatpush.msra.mxu0 0.0
      %1043 = vmatpush.msra.mxu0 0.0
      %1044 = vmatpush.msra.mxu0 0.0
      %1045 = vmatpush.msra.mxu0 0.0
      %1046 = vmatpush.msra.mxu0 0.0
      %1047 = vmatpush.msra.mxu0 0.0
      %1048 = vmatpush.msra.mxu0 0.0
      %1049 = vmatpush.msra.mxu0 0.0
      %1050 = vmatpush.msra.mxu0 0.0
      %1051 = vmatpush.msra.mxu0 %v1014
      %1052 = vmatmul.f32.gmra.mxu0 %v1008
      %v1053 = vpop.f32.mrf.mxu0
      %v1054 = vadd.f32 0.0, %v1053
      %1055 = vdwg.mxu0
      %v1056 = vadd.f32 %v982, %v1034
      %v1057 = vadd.f32 %v983, %v1054
      %v1058 = vld [vmem:[%s3] sm:$0xff]
      %1060 = vset.pattern.permute.xlu0 0
      %1061 = vperm.xlu0 %1060, %v1058
      %v1062 = vpop.permute.xlu0 %1061
      %v1064 = vadd.f32 %v1056, %v1062
      %v1065 = vadd.f32 %v1057, %v1062
      %v1066 = vmax.f32 %v1064, 0.0
      %v1067 = vmax.f32 %v1065, 0.0
      %1068 = vrot.lane.b32.xlu0 %v1066, 17
      %v1069 = vpop.permute.xlu0 %1068
      %1070 = vrot.lane.b32.xlu0 %v1067, 17
      %v1071 = vpop.permute.xlu0 %1070
      %v1072 = vsel %vm425, %v1069, %v1071
      %v1073 = vsel %vm425, %v1071, %v1069
      %v1074 = vmul.f32 %v1073, %v430
      %v1075 = vmul.f32 %v1072, %v431
      %v1076 = vld [vmem:[%s4] sm:$0xff]
      %1077 = vrot.lane.b32.xlu0 %v1066, 16
      %v1078 = vpop.permute.xlu0 %1077
      %1079 = vrot.lane.b32.xlu0 %v1067, 16
      %v1080 = vpop.permute.xlu0 %1079
      %v1081 = vsel %vm446, %v1078, %v1080
      %v1082 = vsel %vm446, %v1080, %v1078
      %v1083 = vmul.f32 %v1082, %v452
      %v1084 = vmul.f32 %v1081, %v453
      %s1085 = scalar_lea.vmem %s4, 8
      %v1086 = vld [vmem:[%s1085] sm:$0xff]
      %vm1087 = vcmask 64512
      %v1089 = vsel %vm1087, %v1086, 0
      %1091 = vmatpush.msra.mxu0 0.0
      %1092 = vmatpush.msra.mxu0 0.0
      %1093 = vmatpush.msra.mxu0 0.0
      %1094 = vmatpush.msra.mxu0 0.0
      %1095 = vmatpush.msra.mxu0 0.0
      %1096 = vmatpush.msra.mxu0 0.0
      %1097 = vmatpush.msra.mxu0 0.0
      %1098 = vmatpush.msra.mxu0 0.0
      %1099 = vmatpush.msra.mxu0 0.0
      %1100 = vmatpush.msra.mxu0 0.0
      %1101 = vmatpush.msra.mxu0 0.0
      %1102 = vmatpush.msra.mxu0 0.0
      %1103 = vmatpush.msra.mxu0 0.0
      %1104 = vmatpush.msra.mxu0 0.0
      %1105 = vmatpush.msra.mxu0 0.0
      %1106 = vmatpush.msra.mxu0 %v1083
      %1107 = vmatmul.f32.gmra.mxu0 %v1089
      %v1108 = vpop.f32.mrf.mxu0
      %v1109 = vadd.f32 0.0, %v1108
      %1110 = vdwg.mxu0
      %1111 = vmatpush.msra.mxu0 0.0
      %1112 = vmatpush.msra.mxu0 0.0
      %1113 = vmatpush.msra.mxu0 0.0
      %1114 = vmatpush.msra.mxu0 0.0
      %1115 = vmatpush.msra.mxu0 0.0
      %1116 = vmatpush.msra.mxu0 0.0
      %1117 = vmatpush.msra.mxu0 0.0
      %1118 = vmatpush.msra.mxu0 0.0
      %1119 = vmatpush.msra.mxu0 0.0
      %1120 = vmatpush.msra.mxu0 0.0
      %1121 = vmatpush.msra.mxu0 0.0
      %1122 = vmatpush.msra.mxu0 0.0
      %1123 = vmatpush.msra.mxu0 0.0
      %1124 = vmatpush.msra.mxu0 0.0
      %1125 = vmatpush.msra.mxu0 0.0
      %1126 = vmatpush.msra.mxu0 %v1084
      %1127 = vmatmul.f32.gmra.mxu0 %v1089
      %v1128 = vpop.f32.mrf.mxu0
      %v1129 = vadd.f32 0.0, %v1128
      %1130 = vdwg.mxu0
      %v1132 = vsel %vm1087, %v1076, 0
      %1134 = vmatpush.msra.mxu0 0.0
      %1135 = vmatpush.msra.mxu0 0.0
      %1136 = vmatpush.msra.mxu0 0.0
      %1137 = vmatpush.msra.mxu0 0.0
      %1138 = vmatpush.msra.mxu0 0.0
      %1139 = vmatpush.msra.mxu0 0.0
      %1140 = vmatpush.msra.mxu0 0.0
      %1141 = vmatpush.msra.mxu0 0.0
      %1142 = vmatpush.msra.mxu0 0.0
      %1143 = vmatpush.msra.mxu0 0.0
      %1144 = vmatpush.msra.mxu0 0.0
      %1145 = vmatpush.msra.mxu0 0.0
      %1146 = vmatpush.msra.mxu0 0.0
      %1147 = vmatpush.msra.mxu0 0.0
      %1148 = vmatpush.msra.mxu0 0.0
      %1149 = vmatpush.msra.mxu0 %v1074
      %1150 = vmatmul.f32.gmra.mxu0 %v1132
      %v1151 = vpop.f32.mrf.mxu0
      %v1152 = vadd.f32 %v1109, %v1151
      %1153 = vdwg.mxu0
      %1154 = vmatpush.msra.mxu0 0.0
      %1155 = vmatpush.msra.mxu0 0.0
      %1156 = vmatpush.msra.mxu0 0.0
      %1157 = vmatpush.msra.mxu0 0.0
      %1158 = vmatpush.msra.mxu0 0.0
      %1159 = vmatpush.msra.mxu0 0.0
      %1160 = vmatpush.msra.mxu0 0.0
      %1161 = vmatpush.msra.mxu0 0.0
      %1162 = vmatpush.msra.mxu0 0.0
      %1163 = vmatpush.msra.mxu0 0.0
      %1164 = vmatpush.msra.mxu0 0.0
      %1165 = vmatpush.msra.mxu0 0.0
      %1166 = vmatpush.msra.mxu0 0.0
      %1167 = vmatpush.msra.mxu0 0.0
      %1168 = vmatpush.msra.mxu0 0.0
      %1169 = vmatpush.msra.mxu0 %v1075
      %1170 = vmatmul.f32.gmra.mxu0 %v1132
      %v1171 = vpop.f32.mrf.mxu0
      %v1172 = vadd.f32 %v1129, %v1171
      %1173 = vdwg.mxu0
      %1174 = vrot.lane.b32.xlu0 %v1066, 15
      %v1175 = vpop.permute.xlu0 %1174
      %1176 = vrot.lane.b32.xlu0 %v1067, 15
      %v1177 = vpop.permute.xlu0 %1176
      %v1178 = vsel %vm569, %v1175, %v1177
      %v1179 = vsel %vm569, %v1177, %v1175
      %v1180 = vmul.f32 %v1179, %v575
      %v1181 = vmul.f32 %v1178, %v576
      %s1182 = scalar_lea.vmem %s4, 16
      %v1183 = vld [vmem:[%s1182] sm:$0xff]
      %v1185 = vsel %vm1087, %v1183, 0
      %1187 = vmatpush.msra.mxu0 0.0
      %1188 = vmatpush.msra.mxu0 0.0
      %1189 = vmatpush.msra.mxu0 0.0
      %1190 = vmatpush.msra.mxu0 0.0
      %1191 = vmatpush.msra.mxu0 0.0
      %1192 = vmatpush.msra.mxu0 0.0
      %1193 = vmatpush.msra.mxu0 0.0
      %1194 = vmatpush.msra.mxu0 0.0
      %1195 = vmatpush.msra.mxu0 0.0
      %1196 = vmatpush.msra.mxu0 0.0
      %1197 = vmatpush.msra.mxu0 0.0
      %1198 = vmatpush.msra.mxu0 0.0
      %1199 = vmatpush.msra.mxu0 0.0
      %1200 = vmatpush.msra.mxu0 0.0
      %1201 = vmatpush.msra.mxu0 0.0
      %1202 = vmatpush.msra.mxu0 %v1180
      %1203 = vmatmul.f32.gmra.mxu0 %v1185
      %v1204 = vpop.f32.mrf.mxu0
      %v1205 = vadd.f32 0.0, %v1204
      %1206 = vdwg.mxu0
      %1207 = vmatpush.msra.mxu0 0.0
      %1208 = vmatpush.msra.mxu0 0.0
      %1209 = vmatpush.msra.mxu0 0.0
      %1210 = vmatpush.msra.mxu0 0.0
      %1211 = vmatpush.msra.mxu0 0.0
      %1212 = vmatpush.msra.mxu0 0.0
      %1213 = vmatpush.msra.mxu0 0.0
      %1214 = vmatpush.msra.mxu0 0.0
      %1215 = vmatpush.msra.mxu0 0.0
      %1216 = vmatpush.msra.mxu0 0.0
      %1217 = vmatpush.msra.mxu0 0.0
      %1218 = vmatpush.msra.mxu0 0.0
      %1219 = vmatpush.msra.mxu0 0.0
      %1220 = vmatpush.msra.mxu0 0.0
      %1221 = vmatpush.msra.mxu0 0.0
      %1222 = vmatpush.msra.mxu0 %v1181
      %1223 = vmatmul.f32.gmra.mxu0 %v1185
      %v1224 = vpop.f32.mrf.mxu0
      %v1225 = vadd.f32 0.0, %v1224
      %1226 = vdwg.mxu0
      %v1227 = vadd.f32 %v1152, %v1205
      %v1228 = vadd.f32 %v1172, %v1225
      %1229 = vrot.lane.b32.xlu0 %v1066, 1
      %v1230 = vpop.permute.xlu0 %1229
      %1231 = vrot.lane.b32.xlu0 %v1067, 1
      %v1232 = vpop.permute.xlu0 %1231
      %v1233 = vsel %vm643, %v1230, %v1232
      %v1234 = vsel %vm643, %v1232, %v1230
      %v1235 = vmul.f32 %v1234, %v649
      %v1236 = vmul.f32 %v1233, %v650
      %s1237 = scalar_lea.vmem %s4, 24
      %v1238 = vld [vmem:[%s1237] sm:$0xff]
      %v1240 = vsel %vm1087, %v1238, 0
      %1242 = vmatpush.msra.mxu0 0.0
      %1243 = vmatpush.msra.mxu0 0.0
      %1244 = vmatpush.msra.mxu0 0.0
      %1245 = vmatpush.msra.mxu0 0.0
      %1246 = vmatpush.msra.mxu0 0.0
      %1247 = vmatpush.msra.mxu0 0.0
      %1248 = vmatpush.msra.mxu0 0.0
      %1249 = vmatpush.msra.mxu0 0.0
      %1250 = vmatpush.msra.mxu0 0.0
      %1251 = vmatpush.msra.mxu0 0.0
      %1252 = vmatpush.msra.mxu0 0.0
      %1253 = vmatpush.msra.mxu0 0.0
      %1254 = vmatpush.msra.mxu0 0.0
      %1255 = vmatpush.msra.mxu0 0.0
      %1256 = vmatpush.msra.mxu0 0.0
      %1257 = vmatpush.msra.mxu0 %v1235
      %1258 = vmatmul.f32.gmra.mxu0 %v1240
      %v1259 = vpop.f32.mrf.mxu0
      %v1260 = vadd.f32 0.0, %v1259
      %1261 = vdwg.mxu0
      %1262 = vmatpush.msra.mxu0 0.0
      %1263 = vmatpush.msra.mxu0 0.0
      %1264 = vmatpush.msra.mxu0 0.0
      %1265 = vmatpush.msra.mxu0 0.0
      %1266 = vmatpush.msra.mxu0 0.0
      %1267 = vmatpush.msra.mxu0 0.0
      %1268 = vmatpush.msra.mxu0 0.0
      %1269 = vmatpush.msra.mxu0 0.0
      %1270 = vmatpush.msra.mxu0 0.0
      %1271 = vmatpush.msra.mxu0 0.0
      %1272 = vmatpush.msra.mxu0 0.0
      %1273 = vmatpush.msra.mxu0 0.0
      %1274 = vmatpush.msra.mxu0 0.0
      %1275 = vmatpush.msra.mxu0 0.0
      %1276 = vmatpush.msra.mxu0 0.0
      %1277 = vmatpush.msra.mxu0 %v1236
      %1278 = vmatmul.f32.gmra.mxu0 %v1240
      %v1279 = vpop.f32.mrf.mxu0
      %v1280 = vadd.f32 0.0, %v1279
      %1281 = vdwg.mxu0
      %v1282 = vadd.f32 %v1227, %v1260
      %v1283 = vadd.f32 %v1228, %v1280
      %s1284 = scalar_lea.vmem %s4, 32
      %v1285 = vld [vmem:[%s1284] sm:$0xff]
      %v1287 = vsel %vm1087, %v1285, 0
      %1289 = vmatpush.msra.mxu0 0.0
      %1290 = vmatpush.msra.mxu0 0.0
      %1291 = vmatpush.msra.mxu0 0.0
      %1292 = vmatpush.msra.mxu0 0.0
      %1293 = vmatpush.msra.mxu0 0.0
      %1294 = vmatpush.msra.mxu0 0.0
      %1295 = vmatpush.msra.mxu0 0.0
      %1296 = vmatpush.msra.mxu0 0.0
      %1297 = vmatpush.msra.mxu0 0.0
      %1298 = vmatpush.msra.mxu0 0.0
      %1299 = vmatpush.msra.mxu0 0.0
      %1300 = vmatpush.msra.mxu0 0.0
      %1301 = vmatpush.msra.mxu0 0.0
      %1302 = vmatpush.msra.mxu0 0.0
      %1303 = vmatpush.msra.mxu0 0.0
      %1304 = vmatpush.msra.mxu0 %v1066
      %1305 = vmatmul.f32.gmra.mxu0 %v1287
      %v1306 = vpop.f32.mrf.mxu0
      %v1307 = vadd.f32 0.0, %v1306
      %1308 = vdwg.mxu0
      %1309 = vmatpush.msra.mxu0 0.0
      %1310 = vmatpush.msra.mxu0 0.0
      %1311 = vmatpush.msra.mxu0 0.0
      %1312 = vmatpush.msra.mxu0 0.0
      %1313 = vmatpush.msra.mxu0 0.0
      %1314 = vmatpush.msra.mxu0 0.0
      %1315 = vmatpush.msra.mxu0 0.0
      %1316 = vmatpush.msra.mxu0 0.0
      %1317 = vmatpush.msra.mxu0 0.0
      %1318 = vmatpush.msra.mxu0 0.0
      %1319 = vmatpush.msra.mxu0 0.0
      %1320 = vmatpush.msra.mxu0 0.0
      %1321 = vmatpush.msra.mxu0 0.0
      %1322 = vmatpush.msra.mxu0 0.0
      %1323 = vmatpush.msra.mxu0 0.0
      %1324 = vmatpush.msra.mxu0 %v1067
      %1325 = vmatmul.f32.gmra.mxu0 %v1287
      %v1326 = vpop.f32.mrf.mxu0
      %v1327 = vadd.f32 0.0, %v1326
      %1328 = vdwg.mxu0
      %v1329 = vadd.f32 %v1282, %v1307
      %v1330 = vadd.f32 %v1283, %v1327
      %1331 = vrot.lane.b32.xlu0 %v1066, 127
      %v1332 = vpop.permute.xlu0 %1331
      %1333 = vrot.lane.b32.xlu0 %v1067, 127
      %v1334 = vpop.permute.xlu0 %1333
      %v1335 = vsel %vm771, %v1332, %v1334
      %v1336 = vsel %vm771, %v1334, %v1332
      %v1337 = vmul.f32 %v1335, %v777
      %v1338 = vmul.f32 %v1336, %v778
      %s1339 = scalar_lea.vmem %s4, 40
      %v1340 = vld [vmem:[%s1339] sm:$0xff]
      %v1342 = vsel %vm1087, %v1340, 0
      %1344 = vmatpush.msra.mxu0 0.0
      %1345 = vmatpush.msra.mxu0 0.0
      %1346 = vmatpush.msra.mxu0 0.0
      %1347 = vmatpush.msra.mxu0 0.0
      %1348 = vmatpush.msra.mxu0 0.0
      %1349 = vmatpush.msra.mxu0 0.0
      %1350 = vmatpush.msra.mxu0 0.0
      %1351 = vmatpush.msra.mxu0 0.0
      %1352 = vmatpush.msra.mxu0 0.0
      %1353 = vmatpush.msra.mxu0 0.0
      %1354 = vmatpush.msra.mxu0 0.0
      %1355 = vmatpush.msra.mxu0 0.0
      %1356 = vmatpush.msra.mxu0 0.0
      %1357 = vmatpush.msra.mxu0 0.0
      %1358 = vmatpush.msra.mxu0 0.0
      %1359 = vmatpush.msra.mxu0 %v1337
      %1360 = vmatmul.f32.gmra.mxu0 %v1342
      %v1361 = vpop.f32.mrf.mxu0
      %v1362 = vadd.f32 0.0, %v1361
      %1363 = vdwg.mxu0
      %1364 = vmatpush.msra.mxu0 0.0
      %1365 = vmatpush.msra.mxu0 0.0
      %1366 = vmatpush.msra.mxu0 0.0
      %1367 = vmatpush.msra.mxu0 0.0
      %1368 = vmatpush.msra.mxu0 0.0
      %1369 = vmatpush.msra.mxu0 0.0
      %1370 = vmatpush.msra.mxu0 0.0
      %1371 = vmatpush.msra.mxu0 0.0
      %1372 = vmatpush.msra.mxu0 0.0
      %1373 = vmatpush.msra.mxu0 0.0
      %1374 = vmatpush.msra.mxu0 0.0
      %1375 = vmatpush.msra.mxu0 0.0
      %1376 = vmatpush.msra.mxu0 0.0
      %1377 = vmatpush.msra.mxu0 0.0
      %1378 = vmatpush.msra.mxu0 0.0
      %1379 = vmatpush.msra.mxu0 %v1338
      %1380 = vmatmul.f32.gmra.mxu0 %v1342
      %v1381 = vpop.f32.mrf.mxu0
      %v1382 = vadd.f32 0.0, %v1381
      %1383 = vdwg.mxu0
      %v1384 = vadd.f32 %v1329, %v1362
      %v1385 = vadd.f32 %v1330, %v1382
      %1386 = vrot.lane.b32.xlu0 %v1066, 113
      %v1387 = vpop.permute.xlu0 %1386
      %1388 = vrot.lane.b32.xlu0 %v1067, 113
      %v1389 = vpop.permute.xlu0 %1388
      %v1390 = vsel %vm845, %v1387, %v1389
      %v1391 = vsel %vm845, %v1389, %v1387
      %v1392 = vmul.f32 %v1390, %v851
      %v1393 = vmul.f32 %v1391, %v852
      %s1394 = scalar_lea.vmem %s4, 48
      %v1395 = vld [vmem:[%s1394] sm:$0xff]
      %v1397 = vsel %vm1087, %v1395, 0
      %1399 = vmatpush.msra.mxu0 0.0
      %1400 = vmatpush.msra.mxu0 0.0
      %1401 = vmatpush.msra.mxu0 0.0
      %1402 = vmatpush.msra.mxu0 0.0
      %1403 = vmatpush.msra.mxu0 0.0
      %1404 = vmatpush.msra.mxu0 0.0
      %1405 = vmatpush.msra.mxu0 0.0
      %1406 = vmatpush.msra.mxu0 0.0
      %1407 = vmatpush.msra.mxu0 0.0
      %1408 = vmatpush.msra.mxu0 0.0
      %1409 = vmatpush.msra.mxu0 0.0
      %1410 = vmatpush.msra.mxu0 0.0
      %1411 = vmatpush.msra.mxu0 0.0
      %1412 = vmatpush.msra.mxu0 0.0
      %1413 = vmatpush.msra.mxu0 0.0
      %1414 = vmatpush.msra.mxu0 %v1392
      %1415 = vmatmul.f32.gmra.mxu0 %v1397
      %v1416 = vpop.f32.mrf.mxu0
      %v1417 = vadd.f32 0.0, %v1416
      %1418 = vdwg.mxu0
      %1419 = vmatpush.msra.mxu0 0.0
      %1420 = vmatpush.msra.mxu0 0.0
      %1421 = vmatpush.msra.mxu0 0.0
      %1422 = vmatpush.msra.mxu0 0.0
      %1423 = vmatpush.msra.mxu0 0.0
      %1424 = vmatpush.msra.mxu0 0.0
      %1425 = vmatpush.msra.mxu0 0.0
      %1426 = vmatpush.msra.mxu0 0.0
      %1427 = vmatpush.msra.mxu0 0.0
      %1428 = vmatpush.msra.mxu0 0.0
      %1429 = vmatpush.msra.mxu0 0.0
      %1430 = vmatpush.msra.mxu0 0.0
      %1431 = vmatpush.msra.mxu0 0.0
      %1432 = vmatpush.msra.mxu0 0.0
      %1433 = vmatpush.msra.mxu0 0.0
      %1434 = vmatpush.msra.mxu0 %v1393
      %1435 = vmatmul.f32.gmra.mxu0 %v1397
      %v1436 = vpop.f32.mrf.mxu0
      %v1437 = vadd.f32 0.0, %v1436
      %1438 = vdwg.mxu0
      %v1439 = vadd.f32 %v1384, %v1417
      %v1440 = vadd.f32 %v1385, %v1437
      %1441 = vrot.lane.b32.xlu0 %v1066, 112
      %v1442 = vpop.permute.xlu0 %1441
      %1443 = vrot.lane.b32.xlu0 %v1067, 112
      %v1444 = vpop.permute.xlu0 %1443
      %v1445 = vsel %vm919, %v1442, %v1444
      %v1446 = vsel %vm919, %v1444, %v1442
      %v1447 = vmul.f32 %v1445, %v925
      %v1448 = vmul.f32 %v1446, %v926
      %s1449 = scalar_lea.vmem %s4, 56
      %v1450 = vld [vmem:[%s1449] sm:$0xff]
      %v1452 = vsel %vm1087, %v1450, 0
      %1454 = vmatpush.msra.mxu0 0.0
      %1455 = vmatpush.msra.mxu0 0.0
      %1456 = vmatpush.msra.mxu0 0.0
      %1457 = vmatpush.msra.mxu0 0.0
      %1458 = vmatpush.msra.mxu0 0.0
      %1459 = vmatpush.msra.mxu0 0.0
      %1460 = vmatpush.msra.mxu0 0.0
      %1461 = vmatpush.msra.mxu0 0.0
      %1462 = vmatpush.msra.mxu0 0.0
      %1463 = vmatpush.msra.mxu0 0.0
      %1464 = vmatpush.msra.mxu0 0.0
      %1465 = vmatpush.msra.mxu0 0.0
      %1466 = vmatpush.msra.mxu0 0.0
      %1467 = vmatpush.msra.mxu0 0.0
      %1468 = vmatpush.msra.mxu0 0.0
      %1469 = vmatpush.msra.mxu0 %v1447
      %1470 = vmatmul.f32.gmra.mxu0 %v1452
      %v1471 = vpop.f32.mrf.mxu0
      %v1472 = vadd.f32 0.0, %v1471
      %1473 = vdwg.mxu0
      %1474 = vmatpush.msra.mxu0 0.0
      %1475 = vmatpush.msra.mxu0 0.0
      %1476 = vmatpush.msra.mxu0 0.0
      %1477 = vmatpush.msra.mxu0 0.0
      %1478 = vmatpush.msra.mxu0 0.0
      %1479 = vmatpush.msra.mxu0 0.0
      %1480 = vmatpush.msra.mxu0 0.0
      %1481 = vmatpush.msra.mxu0 0.0
      %1482 = vmatpush.msra.mxu0 0.0
      %1483 = vmatpush.msra.mxu0 0.0
      %1484 = vmatpush.msra.mxu0 0.0
      %1485 = vmatpush.msra.mxu0 0.0
      %1486 = vmatpush.msra.mxu0 0.0
      %1487 = vmatpush.msra.mxu0 0.0
      %1488 = vmatpush.msra.mxu0 0.0
      %1489 = vmatpush.msra.mxu0 %v1448
      %1490 = vmatmul.f32.gmra.mxu0 %v1452
      %v1491 = vpop.f32.mrf.mxu0
      %v1492 = vadd.f32 0.0, %v1491
      %1493 = vdwg.mxu0
      %v1494 = vadd.f32 %v1439, %v1472
      %v1495 = vadd.f32 %v1440, %v1492
      %1496 = vrot.lane.b32.xlu0 %v1066, 111
      %v1497 = vpop.permute.xlu0 %1496
      %1498 = vrot.lane.b32.xlu0 %v1067, 111
      %v1499 = vpop.permute.xlu0 %1498
      %v1500 = vsel %vm993, %v1497, %v1499
      %v1501 = vsel %vm993, %v1499, %v1497
      %v1502 = vmul.f32 %v1500, %v999
      %v1503 = vmul.f32 %v1501, %v1000
      %s1504 = scalar_lea.vmem %s4, 64
      %v1505 = vld [vmem:[%s1504] sm:$0xff]
      %v1507 = vsel %vm1087, %v1505, 0
      %1509 = vmatpush.msra.mxu0 0.0
      %1510 = vmatpush.msra.mxu0 0.0
      %1511 = vmatpush.msra.mxu0 0.0
      %1512 = vmatpush.msra.mxu0 0.0
      %1513 = vmatpush.msra.mxu0 0.0
      %1514 = vmatpush.msra.mxu0 0.0
      %1515 = vmatpush.msra.mxu0 0.0
      %1516 = vmatpush.msra.mxu0 0.0
      %1517 = vmatpush.msra.mxu0 0.0
      %1518 = vmatpush.msra.mxu0 0.0
      %1519 = vmatpush.msra.mxu0 0.0
      %1520 = vmatpush.msra.mxu0 0.0
      %1521 = vmatpush.msra.mxu0 0.0
      %1522 = vmatpush.msra.mxu0 0.0
      %1523 = vmatpush.msra.mxu0 0.0
      %1524 = vmatpush.msra.mxu0 %v1502
      %1525 = vmatmul.f32.gmra.mxu0 %v1507
      %v1526 = vpop.f32.mrf.mxu0
      %v1527 = vadd.f32 0.0, %v1526
      %1528 = vdwg.mxu0
      %1529 = vmatpush.msra.mxu0 0.0
      %1530 = vmatpush.msra.mxu0 0.0
      %1531 = vmatpush.msra.mxu0 0.0
      %1532 = vmatpush.msra.mxu0 0.0
      %1533 = vmatpush.msra.mxu0 0.0
      %1534 = vmatpush.msra.mxu0 0.0
      %1535 = vmatpush.msra.mxu0 0.0
      %1536 = vmatpush.msra.mxu0 0.0
      %1537 = vmatpush.msra.mxu0 0.0
      %1538 = vmatpush.msra.mxu0 0.0
      %1539 = vmatpush.msra.mxu0 0.0
      %1540 = vmatpush.msra.mxu0 0.0
      %1541 = vmatpush.msra.mxu0 0.0
      %1542 = vmatpush.msra.mxu0 0.0
      %1543 = vmatpush.msra.mxu0 0.0
      %1544 = vmatpush.msra.mxu0 %v1503
      %1545 = vmatmul.f32.gmra.mxu0 %v1507
      %v1546 = vpop.f32.mrf.mxu0
      %v1547 = vadd.f32 0.0, %v1546
      %1548 = vdwg.mxu0
      %v1549 = vadd.f32 %v1494, %v1527
      %v1550 = vadd.f32 %v1495, %v1547
      %v1551 = vld [vmem:[%s5] sm:$0xff]
      %1553 = vset.pattern.permute.xlu0 0
      %1554 = vperm.xlu0 %1553, %v1551
      %v1555 = vpop.permute.xlu0 %1554
      %v1557 = vadd.f32 %v1549, %v1555
      %v1558 = vadd.f32 %v1550, %v1555
      %v1559 = vmax.f32 %v1557, 0.0
      %v1560 = vmax.f32 %v1558, 0.0
      %1561 = vrot.lane.b32.xlu0 %v1559, 127
      %v1562 = vpop.permute.xlu0 %1561
      %1563 = vrot.lane.b32.xlu0 %v1560, 127
      %v1564 = vpop.permute.xlu0 %1563
      %v1565 = vsel %vm771, %v1562, %v1564
      %v1566 = vsel %vm771, %v1564, %v1562
      %v1567 = vmax.f32 %v1559, %v1565
      %v1568 = vmax.f32 %v1560, %v1566
      %1569 = vrot.lane.b32.xlu0 %v1567, 112
      %v1570 = vpop.permute.xlu0 %1569
      %1571 = vrot.lane.b32.xlu0 %v1568, 112
      %v1572 = vpop.permute.xlu0 %1571
      %v1573 = vsel %vm919, %v1570, %v1572
      %v1574 = vsel %vm919, %v1572, %v1570
      %v1575 = vmax.f32 %v1567, %v1573
      %v1576 = vmax.f32 %v1568, %v1574
      %v1577 = vld [vmem:[%s6] sm:$0xff]
      %v1578 = vld [vmem:[%s6 + $0x8] sm:$0xff]
      %v1579 = vld [vmem:[%s6 + $0x10] sm:$0xff]
      %v1580 = vld [vmem:[%s6 + $0x18] sm:$0xff]
      %v1581 = vld [vmem:[%s6 + $0x20] sm:$0xff]
      %v1582 = vld [vmem:[%s6 + $0x28] sm:$0xff]
      %v1583 = vld [vmem:[%s6 + $0x30] sm:$0xff]
      %v1584 = vld [vmem:[%s6 + $0x38] sm:$0xff]
      %v1585 = vld [vmem:[%s6 + $0x40] sm:$0xff]
      %v1586 = vld [vmem:[%s6 + $0x48] sm:$0xff]
      %v1587 = vld [vmem:[%s6 + $0x50] sm:$0xff]
      %v1588 = vld [vmem:[%s6 + $0x58] sm:$0xff]
      %v1589 = vld [vmem:[%s6 + $0x60] sm:$0xff]
      %v1590 = vld [vmem:[%s6 + $0x68] sm:$0xff]
      %v1591 = vld [vmem:[%s6 + $0x70] sm:$0xff]
      %v1592 = vld [vmem:[%s6 + $0x78] sm:$0xff]
      %v1593 = vld [vmem:[%s6 + $0x80] sm:$0xff]
      %v1594 = vld [vmem:[%s6 + $0x88] sm:$0xff]
      %v1595 = vld [vmem:[%s6 + $0x90] sm:$0xff]
      %v1596 = vld [vmem:[%s6 + $0x98] sm:$0xff]
      %v1597 = vld [vmem:[%s6 + $0xa0] sm:$0xff]
      %v1598 = vld [vmem:[%s6 + $0xa8] sm:$0xff]
      %v1599 = vld [vmem:[%s6 + $0xb0] sm:$0xff]
      %v1600 = vld [vmem:[%s6 + $0xb8] sm:$0xff]
      %v1601 = vld [vmem:[%s6 + $0xc0] sm:$0xff]
      %v1602 = vld [vmem:[%s6 + $0xc8] sm:$0xff]
      %v1603 = vld [vmem:[%s6 + $0xd0] sm:$0xff]
      %v1604 = vld [vmem:[%s6 + $0xd8] sm:$0xff]
      %v1605 = vld [vmem:[%s6 + $0xe0] sm:$0xff]
      %v1606 = vld [vmem:[%s6 + $0xe8] sm:$0xff]
      %v1607 = vld [vmem:[%s6 + $0xf0] sm:$0xff]
      %v1608 = vld [vmem:[%s6 + $0xf8] sm:$0xff]
      %s1609 = scalar_lea.vmem %s6, 256
      %v1610 = vld [vmem:[%s1609] sm:$0xff]
      %v1611 = vld [vmem:[%s1609 + $0x8] sm:$0xff]
      %v1612 = vld [vmem:[%s1609 + $0x10] sm:$0xff]
      %v1613 = vld [vmem:[%s1609 + $0x18] sm:$0xff]
      %v1614 = vld [vmem:[%s1609 + $0x20] sm:$0xff]
      %v1615 = vld [vmem:[%s1609 + $0x28] sm:$0xff]
      %v1616 = vld [vmem:[%s1609 + $0x30] sm:$0xff]
      %v1617 = vld [vmem:[%s1609 + $0x38] sm:$0xff]
      %v1618 = vld [vmem:[%s1609 + $0x40] sm:$0xff]
      %v1619 = vld [vmem:[%s1609 + $0x48] sm:$0xff]
      %v1620 = vld [vmem:[%s1609 + $0x50] sm:$0xff]
      %v1621 = vld [vmem:[%s1609 + $0x58] sm:$0xff]
      %v1622 = vld [vmem:[%s1609 + $0x60] sm:$0xff]
      %v1623 = vld [vmem:[%s1609 + $0x68] sm:$0xff]
      %v1624 = vld [vmem:[%s1609 + $0x70] sm:$0xff]
      %v1625 = vld [vmem:[%s1609 + $0x78] sm:$0xff]
      %v1626 = vld [vmem:[%s1609 + $0x80] sm:$0xff]
      %v1627 = vld [vmem:[%s1609 + $0x88] sm:$0xff]
      %v1628 = vld [vmem:[%s1609 + $0x90] sm:$0xff]
      %v1629 = vld [vmem:[%s1609 + $0x98] sm:$0xff]
      %v1630 = vld [vmem:[%s1609 + $0xa0] sm:$0xff]
      %v1631 = vld [vmem:[%s1609 + $0xa8] sm:$0xff]
      %v1632 = vld [vmem:[%s1609 + $0xb0] sm:$0xff]
      %v1633 = vld [vmem:[%s1609 + $0xb8] sm:$0xff]
      %v1634 = vld [vmem:[%s1609 + $0xc0] sm:$0xff]
      %v1635 = vld [vmem:[%s1609 + $0xc8] sm:$0xff]
      %v1636 = vld [vmem:[%s1609 + $0xd0] sm:$0xff]
      %v1637 = vld [vmem:[%s1609 + $0xd8] sm:$0xff]
      %v1638 = vld [vmem:[%s1609 + $0xe0] sm:$0xff]
      %v1639 = vld [vmem:[%s1609 + $0xe8] sm:$0xff]
      %v1640 = vld [vmem:[%s1609 + $0xf0] sm:$0xff]
      %v1641 = vld [vmem:[%s1609 + $0xf8] sm:$0xff]
      %v1644 = vrot.slane %v1575, 1
      %v1645 = vrot.slane %v1576, 1
      %1648 = vmatpush.msra.mxu0 %v1625
      %1649 = vmatpush.msra.mxu0 %v1624
      %1650 = vmatpush.msra.mxu0 %v1623
      %1651 = vmatpush.msra.mxu0 %v1622
      %1652 = vmatpush.msra.mxu0 %v1621
      %1653 = vmatpush.msra.mxu0 %v1620
      %1654 = vmatpush.msra.mxu0 %v1619
      %1655 = vmatpush.msra.mxu0 %v1618
      %1656 = vmatpush.msra.mxu0 %v1617
      %1657 = vmatpush.msra.mxu0 %v1616
      %1658 = vmatpush.msra.mxu0 %v1615
      %1659 = vmatpush.msra.mxu0 %v1614
      %1660 = vmatpush.msra.mxu0 %v1613
      %1661 = vmatpush.msra.mxu0 %v1612
      %1662 = vmatpush.msra.mxu0 %v1611
      %1663 = vmatpush.msra.mxu0 %v1610
      %1664 = vmatmul.f32.gmra.mxu0 %v1644
      %v1665 = vpop.f32.mrf.mxu0
      %v1666 = vadd.f32 0.0, %v1665
      %1667 = vdwg.mxu0
      %1668 = vmatpush.msra.mxu0 %v1641
      %1669 = vmatpush.msra.mxu0 %v1640
      %1670 = vmatpush.msra.mxu0 %v1639
      %1671 = vmatpush.msra.mxu0 %v1638
      %1672 = vmatpush.msra.mxu0 %v1637
      %1673 = vmatpush.msra.mxu0 %v1636
      %1674 = vmatpush.msra.mxu0 %v1635
      %1675 = vmatpush.msra.mxu0 %v1634
      %1676 = vmatpush.msra.mxu0 %v1633
      %1677 = vmatpush.msra.mxu0 %v1632
      %1678 = vmatpush.msra.mxu0 %v1631
      %1679 = vmatpush.msra.mxu0 %v1630
      %1680 = vmatpush.msra.mxu0 %v1629
      %1681 = vmatpush.msra.mxu0 %v1628
      %1682 = vmatpush.msra.mxu0 %v1627
      %1683 = vmatpush.msra.mxu0 %v1626
      %1684 = vmatmul.f32.gmra.mxu0 %v1645
      %v1685 = vpop.f32.mrf.mxu0
      %v1686 = vadd.f32 %v1666, %v1685
      %1687 = vdwg.mxu0
      %1688 = vmatpush.msra.mxu0 %v1592
      %1689 = vmatpush.msra.mxu0 %v1591
      %1690 = vmatpush.msra.mxu0 %v1590
      %1691 = vmatpush.msra.mxu0 %v1589
      %1692 = vmatpush.msra.mxu0 %v1588
      %1693 = vmatpush.msra.mxu0 %v1587
      %1694 = vmatpush.msra.mxu0 %v1586
      %1695 = vmatpush.msra.mxu0 %v1585
      %1696 = vmatpush.msra.mxu0 %v1584
      %1697 = vmatpush.msra.mxu0 %v1583
      %1698 = vmatpush.msra.mxu0 %v1582
      %1699 = vmatpush.msra.mxu0 %v1581
      %1700 = vmatpush.msra.mxu0 %v1580
      %1701 = vmatpush.msra.mxu0 %v1579
      %1702 = vmatpush.msra.mxu0 %v1578
      %1703 = vmatpush.msra.mxu0 %v1577
      %1704 = vmatmul.f32.gmra.mxu0 %v1575
      %v1705 = vpop.f32.mrf.mxu0
      %v1706 = vadd.f32 %v1686, %v1705
      %1707 = vdwg.mxu0
      %1708 = vmatpush.msra.mxu0 %v1608
      %1709 = vmatpush.msra.mxu0 %v1607
      %1710 = vmatpush.msra.mxu0 %v1606
      %1711 = vmatpush.msra.mxu0 %v1605
      %1712 = vmatpush.msra.mxu0 %v1604
      %1713 = vmatpush.msra.mxu0 %v1603
      %1714 = vmatpush.msra.mxu0 %v1602
      %1715 = vmatpush.msra.mxu0 %v1601
      %1716 = vmatpush.msra.mxu0 %v1600
      %1717 = vmatpush.msra.mxu0 %v1599
      %1718 = vmatpush.msra.mxu0 %v1598
      %1719 = vmatpush.msra.mxu0 %v1597
      %1720 = vmatpush.msra.mxu0 %v1596
      %1721 = vmatpush.msra.mxu0 %v1595
      %1722 = vmatpush.msra.mxu0 %v1594
      %1723 = vmatpush.msra.mxu0 %v1593
      %1724 = vmatmul.f32.gmra.mxu0 %v1576
      %v1725 = vpop.f32.mrf.mxu0
      %v1726 = vadd.f32 %v1706, %v1725
      %1727 = vdwg.mxu0
      %s1728 = scalar_lea.vmem %s6, 512
      %v1729 = vld [vmem:[%s1728] sm:$0xff]
      %v1730 = vld [vmem:[%s1728 + $0x8] sm:$0xff]
      %v1731 = vld [vmem:[%s1728 + $0x10] sm:$0xff]
      %v1732 = vld [vmem:[%s1728 + $0x18] sm:$0xff]
      %v1733 = vld [vmem:[%s1728 + $0x20] sm:$0xff]
      %v1734 = vld [vmem:[%s1728 + $0x28] sm:$0xff]
      %v1735 = vld [vmem:[%s1728 + $0x30] sm:$0xff]
      %v1736 = vld [vmem:[%s1728 + $0x38] sm:$0xff]
      %v1737 = vld [vmem:[%s1728 + $0x40] sm:$0xff]
      %v1738 = vld [vmem:[%s1728 + $0x48] sm:$0xff]
      %v1739 = vld [vmem:[%s1728 + $0x50] sm:$0xff]
      %v1740 = vld [vmem:[%s1728 + $0x58] sm:$0xff]
      %v1741 = vld [vmem:[%s1728 + $0x60] sm:$0xff]
      %v1742 = vld [vmem:[%s1728 + $0x68] sm:$0xff]
      %v1743 = vld [vmem:[%s1728 + $0x70] sm:$0xff]
      %v1744 = vld [vmem:[%s1728 + $0x78] sm:$0xff]
      %v1745 = vld [vmem:[%s1728 + $0x80] sm:$0xff]
      %v1746 = vld [vmem:[%s1728 + $0x88] sm:$0xff]
      %v1747 = vld [vmem:[%s1728 + $0x90] sm:$0xff]
      %v1748 = vld [vmem:[%s1728 + $0x98] sm:$0xff]
      %v1749 = vld [vmem:[%s1728 + $0xa0] sm:$0xff]
      %v1750 = vld [vmem:[%s1728 + $0xa8] sm:$0xff]
      %v1751 = vld [vmem:[%s1728 + $0xb0] sm:$0xff]
      %v1752 = vld [vmem:[%s1728 + $0xb8] sm:$0xff]
      %v1753 = vld [vmem:[%s1728 + $0xc0] sm:$0xff]
      %v1754 = vld [vmem:[%s1728 + $0xc8] sm:$0xff]
      %v1755 = vld [vmem:[%s1728 + $0xd0] sm:$0xff]
      %v1756 = vld [vmem:[%s1728 + $0xd8] sm:$0xff]
      %v1757 = vld [vmem:[%s1728 + $0xe0] sm:$0xff]
      %v1758 = vld [vmem:[%s1728 + $0xe8] sm:$0xff]
      %v1759 = vld [vmem:[%s1728 + $0xf0] sm:$0xff]
      %v1760 = vld [vmem:[%s1728 + $0xf8] sm:$0xff]
      %v1761 = vrot.slane %v1575, 2
      %v1762 = vrot.slane %v1576, 2
      %1765 = vmatpush.msra.mxu0 %v1744
      %1766 = vmatpush.msra.mxu0 %v1743
      %1767 = vmatpush.msra.mxu0 %v1742
      %1768 = vmatpush.msra.mxu0 %v1741
      %1769 = vmatpush.msra.mxu0 %v1740
      %1770 = vmatpush.msra.mxu0 %v1739
      %1771 = vmatpush.msra.mxu0 %v1738
      %1772 = vmatpush.msra.mxu0 %v1737
      %1773 = vmatpush.msra.mxu0 %v1736
      %1774 = vmatpush.msra.mxu0 %v1735
      %1775 = vmatpush.msra.mxu0 %v1734
      %1776 = vmatpush.msra.mxu0 %v1733
      %1777 = vmatpush.msra.mxu0 %v1732
      %1778 = vmatpush.msra.mxu0 %v1731
      %1779 = vmatpush.msra.mxu0 %v1730
      %1780 = vmatpush.msra.mxu0 %v1729
      %1781 = vmatmul.f32.gmra.mxu0 %v1761
      %v1782 = vpop.f32.mrf.mxu0
      %v1783 = vadd.f32 0.0, %v1782
      %1784 = vdwg.mxu0
      %1785 = vmatpush.msra.mxu0 %v1760
      %1786 = vmatpush.msra.mxu0 %v1759
      %1787 = vmatpush.msra.mxu0 %v1758
      %1788 = vmatpush.msra.mxu0 %v1757
      %1789 = vmatpush.msra.mxu0 %v1756
      %1790 = vmatpush.msra.mxu0 %v1755
      %1791 = vmatpush.msra.mxu0 %v1754
      %1792 = vmatpush.msra.mxu0 %v1753
      %1793 = vmatpush.msra.mxu0 %v1752
      %1794 = vmatpush.msra.mxu0 %v1751
      %1795 = vmatpush.msra.mxu0 %v1750
      %1796 = vmatpush.msra.mxu0 %v1749
      %1797 = vmatpush.msra.mxu0 %v1748
      %1798 = vmatpush.msra.mxu0 %v1747
      %1799 = vmatpush.msra.mxu0 %v1746
      %1800 = vmatpush.msra.mxu0 %v1745
      %1801 = vmatmul.f32.gmra.mxu0 %v1762
      %v1802 = vpop.f32.mrf.mxu0
      %v1803 = vadd.f32 %v1783, %v1802
      %1804 = vdwg.mxu0
      %v1805 = vadd.f32 %v1726, %v1803
      %s1806 = scalar_lea.vmem %s6, 768
      %v1807 = vld [vmem:[%s1806] sm:$0xff]
      %v1808 = vld [vmem:[%s1806 + $0x8] sm:$0xff]
      %v1809 = vld [vmem:[%s1806 + $0x10] sm:$0xff]
      %v1810 = vld [vmem:[%s1806 + $0x18] sm:$0xff]
      %v1811 = vld [vmem:[%s1806 + $0x20] sm:$0xff]
      %v1812 = vld [vmem:[%s1806 + $0x28] sm:$0xff]
      %v1813 = vld [vmem:[%s1806 + $0x30] sm:$0xff]
      %v1814 = vld [vmem:[%s1806 + $0x38] sm:$0xff]
      %v1815 = vld [vmem:[%s1806 + $0x40] sm:$0xff]
      %v1816 = vld [vmem:[%s1806 + $0x48] sm:$0xff]
      %v1817 = vld [vmem:[%s1806 + $0x50] sm:$0xff]
      %v1818 = vld [vmem:[%s1806 + $0x58] sm:$0xff]
      %v1819 = vld [vmem:[%s1806 + $0x60] sm:$0xff]
      %v1820 = vld [vmem:[%s1806 + $0x68] sm:$0xff]
      %v1821 = vld [vmem:[%s1806 + $0x70] sm:$0xff]
      %v1822 = vld [vmem:[%s1806 + $0x78] sm:$0xff]
      %v1823 = vld [vmem:[%s1806 + $0x80] sm:$0xff]
      %v1824 = vld [vmem:[%s1806 + $0x88] sm:$0xff]
      %v1825 = vld [vmem:[%s1806 + $0x90] sm:$0xff]
      %v1826 = vld [vmem:[%s1806 + $0x98] sm:$0xff]
      %v1827 = vld [vmem:[%s1806 + $0xa0] sm:$0xff]
      %v1828 = vld [vmem:[%s1806 + $0xa8] sm:$0xff]
      %v1829 = vld [vmem:[%s1806 + $0xb0] sm:$0xff]
      %v1830 = vld [vmem:[%s1806 + $0xb8] sm:$0xff]
      %v1831 = vld [vmem:[%s1806 + $0xc0] sm:$0xff]
      %v1832 = vld [vmem:[%s1806 + $0xc8] sm:$0xff]
      %v1833 = vld [vmem:[%s1806 + $0xd0] sm:$0xff]
      %v1834 = vld [vmem:[%s1806 + $0xd8] sm:$0xff]
      %v1835 = vld [vmem:[%s1806 + $0xe0] sm:$0xff]
      %v1836 = vld [vmem:[%s1806 + $0xe8] sm:$0xff]
      %v1837 = vld [vmem:[%s1806 + $0xf0] sm:$0xff]
      %v1838 = vld [vmem:[%s1806 + $0xf8] sm:$0xff]
      %v1839 = vrot.slane %v1575, 3
      %v1840 = vrot.slane %v1576, 3
      %1843 = vmatpush.msra.mxu0 %v1822
      %1844 = vmatpush.msra.mxu0 %v1821
      %1845 = vmatpush.msra.mxu0 %v1820
      %1846 = vmatpush.msra.mxu0 %v1819
      %1847 = vmatpush.msra.mxu0 %v1818
      %1848 = vmatpush.msra.mxu0 %v1817
      %1849 = vmatpush.msra.mxu0 %v1816
      %1850 = vmatpush.msra.mxu0 %v1815
      %1851 = vmatpush.msra.mxu0 %v1814
      %1852 = vmatpush.msra.mxu0 %v1813
      %1853 = vmatpush.msra.mxu0 %v1812
      %1854 = vmatpush.msra.mxu0 %v1811
      %1855 = vmatpush.msra.mxu0 %v1810
      %1856 = vmatpush.msra.mxu0 %v1809
      %1857 = vmatpush.msra.mxu0 %v1808
      %1858 = vmatpush.msra.mxu0 %v1807
      %1859 = vmatmul.f32.gmra.mxu0 %v1839
      %v1860 = vpop.f32.mrf.mxu0
      %v1861 = vadd.f32 0.0, %v1860
      %1862 = vdwg.mxu0
      %1863 = vmatpush.msra.mxu0 %v1838
      %1864 = vmatpush.msra.mxu0 %v1837
      %1865 = vmatpush.msra.mxu0 %v1836
      %1866 = vmatpush.msra.mxu0 %v1835
      %1867 = vmatpush.msra.mxu0 %v1834
      %1868 = vmatpush.msra.mxu0 %v1833
      %1869 = vmatpush.msra.mxu0 %v1832
      %1870 = vmatpush.msra.mxu0 %v1831
      %1871 = vmatpush.msra.mxu0 %v1830
      %1872 = vmatpush.msra.mxu0 %v1829
      %1873 = vmatpush.msra.mxu0 %v1828
      %1874 = vmatpush.msra.mxu0 %v1827
      %1875 = vmatpush.msra.mxu0 %v1826
      %1876 = vmatpush.msra.mxu0 %v1825
      %1877 = vmatpush.msra.mxu0 %v1824
      %1878 = vmatpush.msra.mxu0 %v1823
      %1879 = vmatmul.f32.gmra.mxu0 %v1840
      %v1880 = vpop.f32.mrf.mxu0
      %v1881 = vadd.f32 %v1861, %v1880
      %1882 = vdwg.mxu0
      %v1883 = vadd.f32 %v1805, %v1881
      %s1884 = scalar_lea.vmem %s6, 1024
      %v1885 = vld [vmem:[%s1884] sm:$0xff]
      %v1886 = vld [vmem:[%s1884 + $0x8] sm:$0xff]
      %v1887 = vld [vmem:[%s1884 + $0x10] sm:$0xff]
      %v1888 = vld [vmem:[%s1884 + $0x18] sm:$0xff]
      %v1889 = vld [vmem:[%s1884 + $0x20] sm:$0xff]
      %v1890 = vld [vmem:[%s1884 + $0x28] sm:$0xff]
      %v1891 = vld [vmem:[%s1884 + $0x30] sm:$0xff]
      %v1892 = vld [vmem:[%s1884 + $0x38] sm:$0xff]
      %v1893 = vld [vmem:[%s1884 + $0x40] sm:$0xff]
      %v1894 = vld [vmem:[%s1884 + $0x48] sm:$0xff]
      %v1895 = vld [vmem:[%s1884 + $0x50] sm:$0xff]
      %v1896 = vld [vmem:[%s1884 + $0x58] sm:$0xff]
      %v1897 = vld [vmem:[%s1884 + $0x60] sm:$0xff]
      %v1898 = vld [vmem:[%s1884 + $0x68] sm:$0xff]
      %v1899 = vld [vmem:[%s1884 + $0x70] sm:$0xff]
      %v1900 = vld [vmem:[%s1884 + $0x78] sm:$0xff]
      %v1901 = vld [vmem:[%s1884 + $0x80] sm:$0xff]
      %v1902 = vld [vmem:[%s1884 + $0x88] sm:$0xff]
      %v1903 = vld [vmem:[%s1884 + $0x90] sm:$0xff]
      %v1904 = vld [vmem:[%s1884 + $0x98] sm:$0xff]
      %v1905 = vld [vmem:[%s1884 + $0xa0] sm:$0xff]
      %v1906 = vld [vmem:[%s1884 + $0xa8] sm:$0xff]
      %v1907 = vld [vmem:[%s1884 + $0xb0] sm:$0xff]
      %v1908 = vld [vmem:[%s1884 + $0xb8] sm:$0xff]
      %v1909 = vld [vmem:[%s1884 + $0xc0] sm:$0xff]
      %v1910 = vld [vmem:[%s1884 + $0xc8] sm:$0xff]
      %v1911 = vld [vmem:[%s1884 + $0xd0] sm:$0xff]
      %v1912 = vld [vmem:[%s1884 + $0xd8] sm:$0xff]
      %v1913 = vld [vmem:[%s1884 + $0xe0] sm:$0xff]
      %v1914 = vld [vmem:[%s1884 + $0xe8] sm:$0xff]
      %v1915 = vld [vmem:[%s1884 + $0xf0] sm:$0xff]
      %v1916 = vld [vmem:[%s1884 + $0xf8] sm:$0xff]
      %v1917 = vrot.slane %v1575, 4
      %v1918 = vrot.slane %v1576, 4
      %1921 = vmatpush.msra.mxu0 %v1900
      %1922 = vmatpush.msra.mxu0 %v1899
      %1923 = vmatpush.msra.mxu0 %v1898
      %1924 = vmatpush.msra.mxu0 %v1897
      %1925 = vmatpush.msra.mxu0 %v1896
      %1926 = vmatpush.msra.mxu0 %v1895
      %1927 = vmatpush.msra.mxu0 %v1894
      %1928 = vmatpush.msra.mxu0 %v1893
      %1929 = vmatpush.msra.mxu0 %v1892
      %1930 = vmatpush.msra.mxu0 %v1891
      %1931 = vmatpush.msra.mxu0 %v1890
      %1932 = vmatpush.msra.mxu0 %v1889
      %1933 = vmatpush.msra.mxu0 %v1888
      %1934 = vmatpush.msra.mxu0 %v1887
      %1935 = vmatpush.msra.mxu0 %v1886
      %1936 = vmatpush.msra.mxu0 %v1885
      %1937 = vmatmul.f32.gmra.mxu0 %v1917
      %v1938 = vpop.f32.mrf.mxu0
      %v1939 = vadd.f32 0.0, %v1938
      %1940 = vdwg.mxu0
      %1941 = vmatpush.msra.mxu0 %v1916
      %1942 = vmatpush.msra.mxu0 %v1915
      %1943 = vmatpush.msra.mxu0 %v1914
      %1944 = vmatpush.msra.mxu0 %v1913
      %1945 = vmatpush.msra.mxu0 %v1912
      %1946 = vmatpush.msra.mxu0 %v1911
      %1947 = vmatpush.msra.mxu0 %v1910
      %1948 = vmatpush.msra.mxu0 %v1909
      %1949 = vmatpush.msra.mxu0 %v1908
      %1950 = vmatpush.msra.mxu0 %v1907
      %1951 = vmatpush.msra.mxu0 %v1906
      %1952 = vmatpush.msra.mxu0 %v1905
      %1953 = vmatpush.msra.mxu0 %v1904
      %1954 = vmatpush.msra.mxu0 %v1903
      %1955 = vmatpush.msra.mxu0 %v1902
      %1956 = vmatpush.msra.mxu0 %v1901
      %1957 = vmatmul.f32.gmra.mxu0 %v1918
      %v1958 = vpop.f32.mrf.mxu0
      %v1959 = vadd.f32 %v1939, %v1958
      %1960 = vdwg.mxu0
      %v1961 = vadd.f32 %v1883, %v1959
      %s1962 = scalar_lea.vmem %s6, 1280
      %v1963 = vld [vmem:[%s1962] sm:$0xff]
      %v1964 = vld [vmem:[%s1962 + $0x8] sm:$0xff]
      %v1965 = vld [vmem:[%s1962 + $0x10] sm:$0xff]
      %v1966 = vld [vmem:[%s1962 + $0x18] sm:$0xff]
      %v1967 = vld [vmem:[%s1962 + $0x20] sm:$0xff]
      %v1968 = vld [vmem:[%s1962 + $0x28] sm:$0xff]
      %v1969 = vld [vmem:[%s1962 + $0x30] sm:$0xff]
      %v1970 = vld [vmem:[%s1962 + $0x38] sm:$0xff]
      %v1971 = vld [vmem:[%s1962 + $0x40] sm:$0xff]
      %v1972 = vld [vmem:[%s1962 + $0x48] sm:$0xff]
      %v1973 = vld [vmem:[%s1962 + $0x50] sm:$0xff]
      %v1974 = vld [vmem:[%s1962 + $0x58] sm:$0xff]
      %v1975 = vld [vmem:[%s1962 + $0x60] sm:$0xff]
      %v1976 = vld [vmem:[%s1962 + $0x68] sm:$0xff]
      %v1977 = vld [vmem:[%s1962 + $0x70] sm:$0xff]
      %v1978 = vld [vmem:[%s1962 + $0x78] sm:$0xff]
      %v1979 = vld [vmem:[%s1962 + $0x80] sm:$0xff]
      %v1980 = vld [vmem:[%s1962 + $0x88] sm:$0xff]
      %v1981 = vld [vmem:[%s1962 + $0x90] sm:$0xff]
      %v1982 = vld [vmem:[%s1962 + $0x98] sm:$0xff]
      %v1983 = vld [vmem:[%s1962 + $0xa0] sm:$0xff]
      %v1984 = vld [vmem:[%s1962 + $0xa8] sm:$0xff]
      %v1985 = vld [vmem:[%s1962 + $0xb0] sm:$0xff]
      %v1986 = vld [vmem:[%s1962 + $0xb8] sm:$0xff]
      %v1987 = vld [vmem:[%s1962 + $0xc0] sm:$0xff]
      %v1988 = vld [vmem:[%s1962 + $0xc8] sm:$0xff]
      %v1989 = vld [vmem:[%s1962 + $0xd0] sm:$0xff]
      %v1990 = vld [vmem:[%s1962 + $0xd8] sm:$0xff]
      %v1991 = vld [vmem:[%s1962 + $0xe0] sm:$0xff]
      %v1992 = vld [vmem:[%s1962 + $0xe8] sm:$0xff]
      %v1993 = vld [vmem:[%s1962 + $0xf0] sm:$0xff]
      %v1994 = vld [vmem:[%s1962 + $0xf8] sm:$0xff]
      %v1995 = vrot.slane %v1575, 5
      %v1996 = vrot.slane %v1576, 5
      %1999 = vmatpush.msra.mxu0 %v1978
      %2000 = vmatpush.msra.mxu0 %v1977
      %2001 = vmatpush.msra.mxu0 %v1976
      %2002 = vmatpush.msra.mxu0 %v1975
      %2003 = vmatpush.msra.mxu0 %v1974
      %2004 = vmatpush.msra.mxu0 %v1973
      %2005 = vmatpush.msra.mxu0 %v1972
      %2006 = vmatpush.msra.mxu0 %v1971
      %2007 = vmatpush.msra.mxu0 %v1970
      %2008 = vmatpush.msra.mxu0 %v1969
      %2009 = vmatpush.msra.mxu0 %v1968
      %2010 = vmatpush.msra.mxu0 %v1967
      %2011 = vmatpush.msra.mxu0 %v1966
      %2012 = vmatpush.msra.mxu0 %v1965
      %2013 = vmatpush.msra.mxu0 %v1964
      %2014 = vmatpush.msra.mxu0 %v1963
      %2015 = vmatmul.f32.gmra.mxu0 %v1995
      %v2016 = vpop.f32.mrf.mxu0
      %v2017 = vadd.f32 0.0, %v2016
      %2018 = vdwg.mxu0
      %2019 = vmatpush.msra.mxu0 %v1994
      %2020 = vmatpush.msra.mxu0 %v1993
      %2021 = vmatpush.msra.mxu0 %v1992
      %2022 = vmatpush.msra.mxu0 %v1991
      %2023 = vmatpush.msra.mxu0 %v1990
      %2024 = vmatpush.msra.mxu0 %v1989
      %2025 = vmatpush.msra.mxu0 %v1988
      %2026 = vmatpush.msra.mxu0 %v1987
      %2027 = vmatpush.msra.mxu0 %v1986
      %2028 = vmatpush.msra.mxu0 %v1985
      %2029 = vmatpush.msra.mxu0 %v1984
      %2030 = vmatpush.msra.mxu0 %v1983
      %2031 = vmatpush.msra.mxu0 %v1982
      %2032 = vmatpush.msra.mxu0 %v1981
      %2033 = vmatpush.msra.mxu0 %v1980
      %2034 = vmatpush.msra.mxu0 %v1979
      %2035 = vmatmul.f32.gmra.mxu0 %v1996
      %v2036 = vpop.f32.mrf.mxu0
      %v2037 = vadd.f32 %v2017, %v2036
      %2038 = vdwg.mxu0
      %v2039 = vadd.f32 %v1961, %v2037
      %s2040 = scalar_lea.vmem %s6, 1536
      %v2041 = vld [vmem:[%s2040] sm:$0xff]
      %v2042 = vld [vmem:[%s2040 + $0x8] sm:$0xff]
      %v2043 = vld [vmem:[%s2040 + $0x10] sm:$0xff]
      %v2044 = vld [vmem:[%s2040 + $0x18] sm:$0xff]
      %v2045 = vld [vmem:[%s2040 + $0x20] sm:$0xff]
      %v2046 = vld [vmem:[%s2040 + $0x28] sm:$0xff]
      %v2047 = vld [vmem:[%s2040 + $0x30] sm:$0xff]
      %v2048 = vld [vmem:[%s2040 + $0x38] sm:$0xff]
      %v2049 = vld [vmem:[%s2040 + $0x40] sm:$0xff]
      %v2050 = vld [vmem:[%s2040 + $0x48] sm:$0xff]
      %v2051 = vld [vmem:[%s2040 + $0x50] sm:$0xff]
      %v2052 = vld [vmem:[%s2040 + $0x58] sm:$0xff]
      %v2053 = vld [vmem:[%s2040 + $0x60] sm:$0xff]
      %v2054 = vld [vmem:[%s2040 + $0x68] sm:$0xff]
      %v2055 = vld [vmem:[%s2040 + $0x70] sm:$0xff]
      %v2056 = vld [vmem:[%s2040 + $0x78] sm:$0xff]
      %v2057 = vld [vmem:[%s2040 + $0x80] sm:$0xff]
      %v2058 = vld [vmem:[%s2040 + $0x88] sm:$0xff]
      %v2059 = vld [vmem:[%s2040 + $0x90] sm:$0xff]
      %v2060 = vld [vmem:[%s2040 + $0x98] sm:$0xff]
      %v2061 = vld [vmem:[%s2040 + $0xa0] sm:$0xff]
      %v2062 = vld [vmem:[%s2040 + $0xa8] sm:$0xff]
      %v2063 = vld [vmem:[%s2040 + $0xb0] sm:$0xff]
      %v2064 = vld [vmem:[%s2040 + $0xb8] sm:$0xff]
      %v2065 = vld [vmem:[%s2040 + $0xc0] sm:$0xff]
      %v2066 = vld [vmem:[%s2040 + $0xc8] sm:$0xff]
      %v2067 = vld [vmem:[%s2040 + $0xd0] sm:$0xff]
      %v2068 = vld [vmem:[%s2040 + $0xd8] sm:$0xff]
      %v2069 = vld [vmem:[%s2040 + $0xe0] sm:$0xff]
      %v2070 = vld [vmem:[%s2040 + $0xe8] sm:$0xff]
      %v2071 = vld [vmem:[%s2040 + $0xf0] sm:$0xff]
      %v2072 = vld [vmem:[%s2040 + $0xf8] sm:$0xff]
      %v2073 = vrot.slane %v1575, 6
      %v2074 = vrot.slane %v1576, 6
      %2077 = vmatpush.msra.mxu0 %v2056
      %2078 = vmatpush.msra.mxu0 %v2055
      %2079 = vmatpush.msra.mxu0 %v2054
      %2080 = vmatpush.msra.mxu0 %v2053
      %2081 = vmatpush.msra.mxu0 %v2052
      %2082 = vmatpush.msra.mxu0 %v2051
      %2083 = vmatpush.msra.mxu0 %v2050
      %2084 = vmatpush.msra.mxu0 %v2049
      %2085 = vmatpush.msra.mxu0 %v2048
      %2086 = vmatpush.msra.mxu0 %v2047
      %2087 = vmatpush.msra.mxu0 %v2046
      %2088 = vmatpush.msra.mxu0 %v2045
      %2089 = vmatpush.msra.mxu0 %v2044
      %2090 = vmatpush.msra.mxu0 %v2043
      %2091 = vmatpush.msra.mxu0 %v2042
      %2092 = vmatpush.msra.mxu0 %v2041
      %2093 = vmatmul.f32.gmra.mxu0 %v2073
      %v2094 = vpop.f32.mrf.mxu0
      %v2095 = vadd.f32 0.0, %v2094
      %2096 = vdwg.mxu0
      %2097 = vmatpush.msra.mxu0 %v2072
      %2098 = vmatpush.msra.mxu0 %v2071
      %2099 = vmatpush.msra.mxu0 %v2070
      %2100 = vmatpush.msra.mxu0 %v2069
      %2101 = vmatpush.msra.mxu0 %v2068
      %2102 = vmatpush.msra.mxu0 %v2067
      %2103 = vmatpush.msra.mxu0 %v2066
      %2104 = vmatpush.msra.mxu0 %v2065
      %2105 = vmatpush.msra.mxu0 %v2064
      %2106 = vmatpush.msra.mxu0 %v2063
      %2107 = vmatpush.msra.mxu0 %v2062
      %2108 = vmatpush.msra.mxu0 %v2061
      %2109 = vmatpush.msra.mxu0 %v2060
      %2110 = vmatpush.msra.mxu0 %v2059
      %2111 = vmatpush.msra.mxu0 %v2058
      %2112 = vmatpush.msra.mxu0 %v2057
      %2113 = vmatmul.f32.gmra.mxu0 %v2074
      %v2114 = vpop.f32.mrf.mxu0
      %v2115 = vadd.f32 %v2095, %v2114
      %2116 = vdwg.mxu0
      %v2117 = vadd.f32 %v2039, %v2115
      %s2118 = scalar_lea.vmem %s6, 1792
      %v2119 = vld [vmem:[%s2118] sm:$0xff]
      %v2120 = vld [vmem:[%s2118 + $0x8] sm:$0xff]
      %v2121 = vld [vmem:[%s2118 + $0x10] sm:$0xff]
      %v2122 = vld [vmem:[%s2118 + $0x18] sm:$0xff]
      %v2123 = vld [vmem:[%s2118 + $0x20] sm:$0xff]
      %v2124 = vld [vmem:[%s2118 + $0x28] sm:$0xff]
      %v2125 = vld [vmem:[%s2118 + $0x30] sm:$0xff]
      %v2126 = vld [vmem:[%s2118 + $0x38] sm:$0xff]
      %v2127 = vld [vmem:[%s2118 + $0x40] sm:$0xff]
      %v2128 = vld [vmem:[%s2118 + $0x48] sm:$0xff]
      %v2129 = vld [vmem:[%s2118 + $0x50] sm:$0xff]
      %v2130 = vld [vmem:[%s2118 + $0x58] sm:$0xff]
      %v2131 = vld [vmem:[%s2118 + $0x60] sm:$0xff]
      %v2132 = vld [vmem:[%s2118 + $0x68] sm:$0xff]
      %v2133 = vld [vmem:[%s2118 + $0x70] sm:$0xff]
      %v2134 = vld [vmem:[%s2118 + $0x78] sm:$0xff]
      %v2135 = vld [vmem:[%s2118 + $0x80] sm:$0xff]
      %v2136 = vld [vmem:[%s2118 + $0x88] sm:$0xff]
      %v2137 = vld [vmem:[%s2118 + $0x90] sm:$0xff]
      %v2138 = vld [vmem:[%s2118 + $0x98] sm:$0xff]
      %v2139 = vld [vmem:[%s2118 + $0xa0] sm:$0xff]
      %v2140 = vld [vmem:[%s2118 + $0xa8] sm:$0xff]
      %v2141 = vld [vmem:[%s2118 + $0xb0] sm:$0xff]
      %v2142 = vld [vmem:[%s2118 + $0xb8] sm:$0xff]
      %v2143 = vld [vmem:[%s2118 + $0xc0] sm:$0xff]
      %v2144 = vld [vmem:[%s2118 + $0xc8] sm:$0xff]
      %v2145 = vld [vmem:[%s2118 + $0xd0] sm:$0xff]
      %v2146 = vld [vmem:[%s2118 + $0xd8] sm:$0xff]
      %v2147 = vld [vmem:[%s2118 + $0xe0] sm:$0xff]
      %v2148 = vld [vmem:[%s2118 + $0xe8] sm:$0xff]
      %v2149 = vld [vmem:[%s2118 + $0xf0] sm:$0xff]
      %v2150 = vld [vmem:[%s2118 + $0xf8] sm:$0xff]
      %v2151 = vrot.slane %v1575, 7
      %v2152 = vrot.slane %v1576, 7
      %2155 = vmatpush.msra.mxu0 %v2134
      %2156 = vmatpush.msra.mxu0 %v2133
      %2157 = vmatpush.msra.mxu0 %v2132
      %2158 = vmatpush.msra.mxu0 %v2131
      %2159 = vmatpush.msra.mxu0 %v2130
      %2160 = vmatpush.msra.mxu0 %v2129
      %2161 = vmatpush.msra.mxu0 %v2128
      %2162 = vmatpush.msra.mxu0 %v2127
      %2163 = vmatpush.msra.mxu0 %v2126
      %2164 = vmatpush.msra.mxu0 %v2125
      %2165 = vmatpush.msra.mxu0 %v2124
      %2166 = vmatpush.msra.mxu0 %v2123
      %2167 = vmatpush.msra.mxu0 %v2122
      %2168 = vmatpush.msra.mxu0 %v2121
      %2169 = vmatpush.msra.mxu0 %v2120
      %2170 = vmatpush.msra.mxu0 %v2119
      %2171 = vmatmul.f32.gmra.mxu0 %v2151
      %v2172 = vpop.f32.mrf.mxu0
      %v2173 = vadd.f32 0.0, %v2172
      %2174 = vdwg.mxu0
      %2175 = vmatpush.msra.mxu0 %v2150
      %2176 = vmatpush.msra.mxu0 %v2149
      %2177 = vmatpush.msra.mxu0 %v2148
      %2178 = vmatpush.msra.mxu0 %v2147
      %2179 = vmatpush.msra.mxu0 %v2146
      %2180 = vmatpush.msra.mxu0 %v2145
      %2181 = vmatpush.msra.mxu0 %v2144
      %2182 = vmatpush.msra.mxu0 %v2143
      %2183 = vmatpush.msra.mxu0 %v2142
      %2184 = vmatpush.msra.mxu0 %v2141
      %2185 = vmatpush.msra.mxu0 %v2140
      %2186 = vmatpush.msra.mxu0 %v2139
      %2187 = vmatpush.msra.mxu0 %v2138
      %2188 = vmatpush.msra.mxu0 %v2137
      %2189 = vmatpush.msra.mxu0 %v2136
      %2190 = vmatpush.msra.mxu0 %v2135
      %2191 = vmatmul.f32.gmra.mxu0 %v2152
      %v2192 = vpop.f32.mrf.mxu0
      %v2193 = vadd.f32 %v2173, %v2192
      %2194 = vdwg.mxu0
      %v2195 = vadd.f32 %v2117, %v2193
      %v2196 = vld [vmem:[%s7] sm:$0x1]
      %v2197 = vadd.f32 %v2195, %v2196
      %v2198 = vmax.f32 %v2197, 0.0
      %v2199 = vld [vmem:[%s8] sm:$0xff]
      %v2200 = vld [vmem:[%s8 + $0x8] sm:$0xff]
      %v2201 = vld [vmem:[%s8 + $0x10] sm:$0xff]
      %v2202 = vld [vmem:[%s8 + $0x18] sm:$0xff]
      %v2203 = vld [vmem:[%s9] sm:$0x1]
      %vm2204 = vcmask 261120
      %v2206 = vsel %vm2204, %v2198, 0
      %2208 = vmatpush.msra.mxu0 0.0
      %2209 = vmatpush.msra.mxu0 0.0
      %2210 = vmatpush.msra.mxu0 0.0
      %2211 = vmatpush.msra.mxu0 0.0
      %2212 = vmatpush.msra.mxu0 0.0
      %2213 = vmatpush.msra.mxu0 0.0
      %2214 = vmatpush.msra.mxu0 0.0
      %2215 = vmatpush.msra.mxu0 0.0
      %2216 = vmatpush.msra.mxu0 0.0
      %2217 = vmatpush.msra.mxu0 0.0
      %2218 = vmatpush.msra.mxu0 0.0
      %2219 = vmatpush.msra.mxu0 0.0
      %2220 = vmatpush.msra.mxu0 %v2202
      %2221 = vmatpush.msra.mxu0 %v2201
      %2222 = vmatpush.msra.mxu0 %v2200
      %2223 = vmatpush.msra.mxu0 %v2199
      %2224 = vmatmul.f32.gmra.mxu0 %v2206
      %v2225 = vpop.f32.mrf.mxu0
      %v2226 = vadd.f32 %v2203, %v2225
      %2227 = vdwg.mxu0
      %v2228 = vmax.f32 %v2226, 0.0
      %v2229 = vld [vmem:[%s10] sm:$0xff]
      %v2230 = vld [vmem:[%s10 + $0x8] sm:$0xff]
      %v2231 = vld [vmem:[%s10 + $0x10] sm:$0xff]
      %v2232 = vld [vmem:[%s10 + $0x18] sm:$0xff]
      %v2233 = vld [vmem:[#allocation2] sm:$0x1]
      %v2235 = vsel %vm2204, %v2228, 0
      %2237 = vmatpush.msra.mxu0 0.0
      %2238 = vmatpush.msra.mxu0 0.0
      %2239 = vmatpush.msra.mxu0 0.0
      %2240 = vmatpush.msra.mxu0 0.0
      %2241 = vmatpush.msra.mxu0 0.0
      %2242 = vmatpush.msra.mxu0 0.0
      %2243 = vmatpush.msra.mxu0 0.0
      %2244 = vmatpush.msra.mxu0 0.0
      %2245 = vmatpush.msra.mxu0 0.0
      %2246 = vmatpush.msra.mxu0 0.0
      %2247 = vmatpush.msra.mxu0 0.0
      %2248 = vmatpush.msra.mxu0 0.0
      %2249 = vmatpush.msra.mxu0 %v2232
      %2250 = vmatpush.msra.mxu0 %v2231
      %2251 = vmatpush.msra.mxu0 %v2230
      %2252 = vmatpush.msra.mxu0 %v2229
      %2253 = vmatmul.f32.gmra.mxu0 %v2235
      %v2254 = vpop.f32.mrf.mxu0
      %v2255 = vadd.f32 %v2233, %v2254
      %2256 = vdwg.mxu0
      %vm2257 = vcmask 0
      %2258 = vst.msk [vmem:[%s411] sm:$0x1] %vm2257, %v2255
      %p2259 = scmp.lt.s32.totalorder %s25, 1
      %s2260 = scalar_select %p2259, %s25, 1
      %s2261 = scalar_lea.vmem %s12, %s2260
      // Predicated region
      $region69: #{cnn_forward.1} parent=67 // pred_check
        %p2262 = pneg %p300
      $region70: #{cnn_forward.1} parent=67 // pred_check_branch
        %2264 = sbr.rel (%p2262) target = $region72
      $region71: #{cnn_forward.1} parent=67 // pred_region
        _
      $region72: #{cnn_forward.1} parent=67 // pred_fallthru
        _
    $region68: #{cnn_forward.1} parent=5 // pred_fallthru
      _
    %p2265 = scmp.le.s32.totalorder 2, %s20
    // Predicated region
    $region73: #{cnn_forward.1} parent=5 // pred_check
      %p2266 = pneg %p2265
    $region74: #{cnn_forward.1} parent=5 // pred_check_branch
      %2268 = sbr.rel (%p2266) target = $region76
    $region75: #{cnn_forward.1} parent=5 // pred_region
      %s2269 = ssub.s32 %s20, 2
      // Predicated region
      $region77: #{cnn_forward.1} parent=75 // pred_check
        %p2270 = pneg %p306
      $region78: #{cnn_forward.1} parent=75 // pred_check_branch
        %2272 = sbr.rel (%p2270) target = $region80
      $region79: #{cnn_forward.1} parent=75 // pred_region
        %p2273 = scmp.lt.s32.totalorder %s26, 1
        %s2274 = scalar_select %p2273, %s26, 1
        %s2275 = scalar_lea.vmem %s12, %s2274
      $region80: #{cnn_forward.1} parent=75 // pred_fallthru
        _
    $region76: #{cnn_forward.1} parent=5 // pred_fallthru
      _
  $region6: #{cnn_forward.1} parent=0 // loop_footer
    %s24 = sadd.s32 1, %s20
  $region7: #{cnn_forward.1} parent=0 // loop_footer_branch
    %19 = sbr.rel target = $region3
  $region8: #{cnn_forward.1} parent=0 // loop_exit
    _

</llo_original>
